<compile_context>
chip_gen: v5e
topology: v5e:2x2
jax: 0.10.0
libtpu: 0.0.40
codegen_flags: <defaults>
</compile_context>

<pallas_src>
import functools
import math

import jax
import jax.numpy as jnp
from jax.experimental import pallas as pl
from jax.experimental.pallas import tpu as pltpu

N_ITEMS = 100       # unused in forward (kept for parity with the module signature)
N_PEOPLE = 10
EMB_DIM = 10
HIDDEN = 512
BN_EPS = 1e-5

# Rows of the packed (8, HIDDEN) f32 vector slab.
ROW_G1, ROW_BE1, ROW_G2, ROW_BE2, ROW_B2, ROW_W3, ROW_B3 = 0, 1, 2, 3, 4, 5, 6

_INV_SQRT2 = 1.0 / math.sqrt(2.0)


def _gelu_exact(x):
    # nn.GELU() default: 0.5 * x * (1 + erf(x / sqrt(2)))
    return 0.5 * x * (1.0 + jax.lax.erf(x * _INV_SQRT2))


def _bn_scale_shift(x, gamma, beta):
    # BatchNorm1d (training mode): biased batch statistics over dim 0.
    # One pass (mean + mean-of-squares), gamma folded into the inverse stddev,
    # variance clamped at 0 to avoid rsqrt of a tiny negative.
    mean = jnp.mean(x, axis=0, keepdims=True)
    mean_sq = jnp.mean(x * x, axis=0, keepdims=True)
    var = jnp.maximum(mean_sq - mean * mean, 0.0)
    scale = jax.lax.rsqrt(var + BN_EPS) * gamma          # (1, H)
    shift = beta - mean * scale                          # (1, H)
    return scale, shift


def value_net_kernel(idx_ref, table_ref, w2_ref, vecs_ref, o_ref):
    # idx_ref:   (B, 1)  int32   person indices
    # table_ref: (N_PEOPLE, 512) f32  fused embedding@w1 + b1
    # w2_ref:    (512, 512) bf16
    # vecs_ref:  (8, 512) f32 packed per-layer vectors
    # o_ref:     (B, 1)  f32
    idx = idx_ref[...]                                   # (B, 1) int32
    B = idx.shape[0]

    # --- Layer 1 pre-activation: where-chain gather of the fused table -------
    # x[b, :] = table[idx[b], :]   (out-of-range indices fall back to row 0)
    x = jnp.broadcast_to(table_ref[0:1, :], (B, HIDDEN))
    for p in range(1, N_PEOPLE):
        x = jnp.where(idx == p, table_ref[p:p + 1, :], x)

    h = _gelu_exact(x)
    scale1, shift1 = _bn_scale_shift(
        h, vecs_ref[ROW_G1:ROW_G1 + 1, :], vecs_ref[ROW_BE1:ROW_BE1 + 1, :])
    h = h * scale1 + shift1

    # --- Layer 2: 512x512 MXU matmul (bf16 operands, f32 accumulate) ---------
    h = jnp.dot(h.astype(jnp.bfloat16), w2_ref[...],
                preferred_element_type=jnp.float32)
    h = h + vecs_ref[ROW_B2:ROW_B2 + 1, :]
    h = _gelu_exact(h)                                   # (B, 512) f32

    # --- BN2 folded into Linear(512, 1) ---------------------------------------
    scale2, shift2 = _bn_scale_shift(
        h, vecs_ref[ROW_G2:ROW_G2 + 1, :], vecs_ref[ROW_BE2:ROW_BE2 + 1, :])
    w3_row = vecs_ref[ROW_W3:ROW_W3 + 1, :]              # (1, 512)
    b3 = vecs_ref[ROW_B3:ROW_B3 + 1, 0:1]                # (1, 1)
    w3_eff = scale2 * w3_row                             # (1, 512)
    b3_eff = jnp.sum(shift2 * w3_row, axis=-1, keepdims=True) + b3   # (1, 1)
    o_ref[...] = jnp.sum(h * w3_eff, axis=-1, keepdims=True) + b3_eff


def init_params(key):
    ks = jax.random.split(key, 7)
    scale1 = 1.0 / math.sqrt(EMB_DIM)
    scale2 = 1.0 / math.sqrt(HIDDEN)
    return {
        "embedding": jax.random.normal(ks[0], (N_PEOPLE, EMB_DIM), jnp.float32),
        # Linear weights stored (in, out): y = x @ W + b.
        "w1": jax.random.uniform(ks[1], (EMB_DIM, HIDDEN), jnp.float32, -scale1, scale1),
        "b1": jax.random.uniform(ks[2], (HIDDEN,), jnp.float32, -scale1, scale1),
        "g1": jnp.ones((HIDDEN,), jnp.float32),
        "be1": jnp.zeros((HIDDEN,), jnp.float32),
        "w2": jax.random.uniform(ks[3], (HIDDEN, HIDDEN), jnp.float32, -scale2, scale2),
        "b2": jax.random.uniform(ks[4], (HIDDEN,), jnp.float32, -scale2, scale2),
        "g2": jnp.ones((HIDDEN,), jnp.float32),
        "be2": jnp.zeros((HIDDEN,), jnp.float32),
        "w3": jax.random.uniform(ks[5], (HIDDEN, 1), jnp.float32, -scale2, scale2),
        "b3": jax.random.uniform(ks[6], (1,), jnp.float32, -scale2, scale2),
    }


def prepare_params(raw):
    """One-time (outside jit) re-packing of the raw module parameters.

    Recompute whenever embedding/w1/b1 change (a 10x10x512 matmul: free).
    """
    fused = raw["embedding"] @ raw["w1"] + raw["b1"]     # (N_PEOPLE, HIDDEN) f32
    vecs = jnp.zeros((8, HIDDEN), jnp.float32)
    vecs = vecs.at[ROW_G1].set(raw["g1"])
    vecs = vecs.at[ROW_BE1].set(raw["be1"])
    vecs = vecs.at[ROW_G2].set(raw["g2"])
    vecs = vecs.at[ROW_BE2].set(raw["be2"])
    vecs = vecs.at[ROW_B2].set(raw["b2"])
    vecs = vecs.at[ROW_W3].set(raw["w3"].reshape(HIDDEN))
    vecs = vecs.at[ROW_B3, 0].set(raw["b3"][0])
    return {
        "table": jnp.asarray(fused, jnp.float32),        # tiny: keep exact
        "w2": jnp.asarray(raw["w2"], jnp.bfloat16),      # halves dominant HBM fetch
        "vecs": vecs,
    }


@functools.partial(jax.jit, static_argnames=())
def value_network_forward(people, prep):
    B = people.shape[0]
    idx = people.reshape(B, 1).astype(jnp.int32)

    vmem = pl.BlockSpec(memory_space=pltpu.MemorySpace.VMEM)
    cost = pl.CostEstimate(
        flops=2 * B * HIDDEN * HIDDEN + 8 * B * HIDDEN,
        transcendentals=2 * B * HIDDEN,
        bytes_accessed=(HIDDEN * HIDDEN * 2            # w2 (bf16)
                        + N_PEOPLE * HIDDEN * 4        # fused table
                        + 8 * HIDDEN * 4               # packed vectors
                        + B * 4 + B * 4),              # idx in, out
    )
    out = pl.pallas_call(
        value_net_kernel,
        out_shape=jax.ShapeDtypeStruct((B, 1), jnp.float32),
        in_specs=[vmem, vmem, vmem, vmem],
        out_specs=vmem,
        compiler_params=pltpu.CompilerParams(vmem_limit_bytes=8 << 20),
        cost_estimate=cost,
    )(idx, prep["table"], prep["w2"], prep["vecs"])
    return out


if __name__ == "__main__":
    key = jax.random.PRNGKey(0)
    k_params, k_idx = jax.random.split(key)
    raw_params = init_params(k_params)
    prep = prepare_params(raw_params)

    B = 8
    people = jax.random.randint(k_idx, (B,), 0, N_PEOPLE, dtype=jnp.int32)

    out = value_network_forward(people, prep)
    out = jax.block_until_ready(out)
    assert out.shape == (B, 1), out.shape
    assert out.dtype == jnp.float32
    assert bool(jnp.all(jnp.isfinite(out)))
    print("KERNEL_OK")
</pallas_src>

<mosaic_0001>
module attributes {stable_mosaic.version = 11 : i64} {
  func.func @value_net_kernel(%arg0: memref<8x1xi32, #tpu.memory_space<vmem>>, %arg1: memref<10x512xf32, #tpu.memory_space<vmem>>, %arg2: memref<512x512xbf16, #tpu.memory_space<vmem>>, %arg3: memref<8x512xf32, #tpu.memory_space<vmem>>, %arg4: memref<8x1xf32, #tpu.memory_space<vmem>>) attributes {dimension_semantics = [], scalar_prefetch = 0 : i64, scratch_operands = 0 : i64, tpu.core_type = #tpu.core_type<tc>} {
    %c0 = arith.constant 0 : index
    %c0_0 = arith.constant 0 : index
    %0 = vector.load %arg0[%c0, %c0_0] : memref<8x1xi32, #tpu.memory_space<vmem>>, vector<8x1xi32>
    %c0_1 = arith.constant 0 : index
    %c0_2 = arith.constant 0 : index
    %1 = vector.load %arg1[%c0_1, %c0_2] : memref<10x512xf32, #tpu.memory_space<vmem>>, vector<1x512xf32>
    %2 = vector.shape_cast %1 : vector<1x512xf32> to vector<1x512xf32>
    %3 = vector.broadcast %2 : vector<1x512xf32> to vector<8x512xf32>
    %c1_i32 = arith.constant 1 : i32
    %4 = vector.broadcast %c1_i32 : i32 to vector<8x1xi32>
    %5 = arith.cmpi eq, %0, %4 : vector<8x1xi32>
    %c1 = arith.constant 1 : index
    %c0_3 = arith.constant 0 : index
    %6 = vector.load %arg1[%c1, %c0_3] : memref<10x512xf32, #tpu.memory_space<vmem>>, vector<1x512xf32>
    %7 = vector.shape_cast %5 : vector<8x1xi1> to vector<8x1xi1>
    %8 = vector.broadcast %7 : vector<8x1xi1> to vector<8x512xi1>
    %9 = vector.shape_cast %6 : vector<1x512xf32> to vector<1x512xf32>
    %10 = vector.broadcast %9 : vector<1x512xf32> to vector<8x512xf32>
    %11 = arith.select %8, %10, %3 : vector<8x512xi1>, vector<8x512xf32>
    %c2_i32 = arith.constant 2 : i32
    %12 = vector.broadcast %c2_i32 : i32 to vector<8x1xi32>
    %13 = arith.cmpi eq, %0, %12 : vector<8x1xi32>
    %c2 = arith.constant 2 : index
    %c0_4 = arith.constant 0 : index
    %14 = vector.load %arg1[%c2, %c0_4] : memref<10x512xf32, #tpu.memory_space<vmem>>, vector<1x512xf32>
    %15 = vector.shape_cast %13 : vector<8x1xi1> to vector<8x1xi1>
    %16 = vector.broadcast %15 : vector<8x1xi1> to vector<8x512xi1>
    %17 = vector.shape_cast %14 : vector<1x512xf32> to vector<1x512xf32>
    %18 = vector.broadcast %17 : vector<1x512xf32> to vector<8x512xf32>
    %19 = arith.select %16, %18, %11 : vector<8x512xi1>, vector<8x512xf32>
    %c3_i32 = arith.constant 3 : i32
    %20 = vector.broadcast %c3_i32 : i32 to vector<8x1xi32>
    %21 = arith.cmpi eq, %0, %20 : vector<8x1xi32>
    %c3 = arith.constant 3 : index
    %c0_5 = arith.constant 0 : index
    %22 = vector.load %arg1[%c3, %c0_5] : memref<10x512xf32, #tpu.memory_space<vmem>>, vector<1x512xf32>
    %23 = vector.shape_cast %21 : vector<8x1xi1> to vector<8x1xi1>
    %24 = vector.broadcast %23 : vector<8x1xi1> to vector<8x512xi1>
    %25 = vector.shape_cast %22 : vector<1x512xf32> to vector<1x512xf32>
    %26 = vector.broadcast %25 : vector<1x512xf32> to vector<8x512xf32>
    %27 = arith.select %24, %26, %19 : vector<8x512xi1>, vector<8x512xf32>
    %c4_i32 = arith.constant 4 : i32
    %28 = vector.broadcast %c4_i32 : i32 to vector<8x1xi32>
    %29 = arith.cmpi eq, %0, %28 : vector<8x1xi32>
    %c4 = arith.constant 4 : index
    %c0_6 = arith.constant 0 : index
    %30 = vector.load %arg1[%c4, %c0_6] : memref<10x512xf32, #tpu.memory_space<vmem>>, vector<1x512xf32>
    %31 = vector.shape_cast %29 : vector<8x1xi1> to vector<8x1xi1>
    %32 = vector.broadcast %31 : vector<8x1xi1> to vector<8x512xi1>
    %33 = vector.shape_cast %30 : vector<1x512xf32> to vector<1x512xf32>
    %34 = vector.broadcast %33 : vector<1x512xf32> to vector<8x512xf32>
    %35 = arith.select %32, %34, %27 : vector<8x512xi1>, vector<8x512xf32>
    %c5_i32 = arith.constant 5 : i32
    %36 = vector.broadcast %c5_i32 : i32 to vector<8x1xi32>
    %37 = arith.cmpi eq, %0, %36 : vector<8x1xi32>
    %c5 = arith.constant 5 : index
    %c0_7 = arith.constant 0 : index
    %38 = vector.load %arg1[%c5, %c0_7] : memref<10x512xf32, #tpu.memory_space<vmem>>, vector<1x512xf32>
    %39 = vector.shape_cast %37 : vector<8x1xi1> to vector<8x1xi1>
    %40 = vector.broadcast %39 : vector<8x1xi1> to vector<8x512xi1>
    %41 = vector.shape_cast %38 : vector<1x512xf32> to vector<1x512xf32>
    %42 = vector.broadcast %41 : vector<1x512xf32> to vector<8x512xf32>
    %43 = arith.select %40, %42, %35 : vector<8x512xi1>, vector<8x512xf32>
    %c6_i32 = arith.constant 6 : i32
    %44 = vector.broadcast %c6_i32 : i32 to vector<8x1xi32>
    %45 = arith.cmpi eq, %0, %44 : vector<8x1xi32>
    %c6 = arith.constant 6 : index
    %c0_8 = arith.constant 0 : index
    %46 = vector.load %arg1[%c6, %c0_8] : memref<10x512xf32, #tpu.memory_space<vmem>>, vector<1x512xf32>
    %47 = vector.shape_cast %45 : vector<8x1xi1> to vector<8x1xi1>
    %48 = vector.broadcast %47 : vector<8x1xi1> to vector<8x512xi1>
    %49 = vector.shape_cast %46 : vector<1x512xf32> to vector<1x512xf32>
    %50 = vector.broadcast %49 : vector<1x512xf32> to vector<8x512xf32>
    %51 = arith.select %48, %50, %43 : vector<8x512xi1>, vector<8x512xf32>
    %c7_i32 = arith.constant 7 : i32
    %52 = vector.broadcast %c7_i32 : i32 to vector<8x1xi32>
    %53 = arith.cmpi eq, %0, %52 : vector<8x1xi32>
    %c7 = arith.constant 7 : index
    %c0_9 = arith.constant 0 : index
    %54 = vector.load %arg1[%c7, %c0_9] : memref<10x512xf32, #tpu.memory_space<vmem>>, vector<1x512xf32>
    %55 = vector.shape_cast %53 : vector<8x1xi1> to vector<8x1xi1>
    %56 = vector.broadcast %55 : vector<8x1xi1> to vector<8x512xi1>
    %57 = vector.shape_cast %54 : vector<1x512xf32> to vector<1x512xf32>
    %58 = vector.broadcast %57 : vector<1x512xf32> to vector<8x512xf32>
    %59 = arith.select %56, %58, %51 : vector<8x512xi1>, vector<8x512xf32>
    %c8_i32 = arith.constant 8 : i32
    %60 = vector.broadcast %c8_i32 : i32 to vector<8x1xi32>
    %61 = arith.cmpi eq, %0, %60 : vector<8x1xi32>
    %c8 = arith.constant 8 : index
    %c0_10 = arith.constant 0 : index
    %62 = vector.load %arg1[%c8, %c0_10] : memref<10x512xf32, #tpu.memory_space<vmem>>, vector<1x512xf32>
    %63 = vector.shape_cast %61 : vector<8x1xi1> to vector<8x1xi1>
    %64 = vector.broadcast %63 : vector<8x1xi1> to vector<8x512xi1>
    %65 = vector.shape_cast %62 : vector<1x512xf32> to vector<1x512xf32>
    %66 = vector.broadcast %65 : vector<1x512xf32> to vector<8x512xf32>
    %67 = arith.select %64, %66, %59 : vector<8x512xi1>, vector<8x512xf32>
    %c9_i32 = arith.constant 9 : i32
    %68 = vector.broadcast %c9_i32 : i32 to vector<8x1xi32>
    %69 = arith.cmpi eq, %0, %68 : vector<8x1xi32>
    %c9 = arith.constant 9 : index
    %c0_11 = arith.constant 0 : index
    %70 = vector.load %arg1[%c9, %c0_11] : memref<10x512xf32, #tpu.memory_space<vmem>>, vector<1x512xf32>
    %71 = vector.shape_cast %69 : vector<8x1xi1> to vector<8x1xi1>
    %72 = vector.broadcast %71 : vector<8x1xi1> to vector<8x512xi1>
    %73 = vector.shape_cast %70 : vector<1x512xf32> to vector<1x512xf32>
    %74 = vector.broadcast %73 : vector<1x512xf32> to vector<8x512xf32>
    %75 = arith.select %72, %74, %67 : vector<8x512xi1>, vector<8x512xf32>
    %cst = arith.constant 5.000000e-01 : f32
    %76 = vector.broadcast %cst : f32 to vector<8x512xf32>
    %77 = arith.mulf %76, %75 : vector<8x512xf32>
    %cst_12 = arith.constant 0.707106769 : f32
    %78 = vector.broadcast %cst_12 : f32 to vector<8x512xf32>
    %79 = arith.mulf %75, %78 : vector<8x512xf32>
    %80 = math.erf %79 : vector<8x512xf32>
    %cst_13 = arith.constant 1.000000e+00 : f32
    %81 = vector.broadcast %cst_13 : f32 to vector<8x512xf32>
    %82 = arith.addf %81, %80 : vector<8x512xf32>
    %83 = arith.mulf %77, %82 : vector<8x512xf32>
    %c0_14 = arith.constant 0 : index
    %c0_15 = arith.constant 0 : index
    %84 = vector.load %arg3[%c0_14, %c0_15] : memref<8x512xf32, #tpu.memory_space<vmem>>, vector<1x512xf32>
    %c1_16 = arith.constant 1 : index
    %c0_17 = arith.constant 0 : index
    %85 = vector.load %arg3[%c1_16, %c0_17] : memref<8x512xf32, #tpu.memory_space<vmem>>, vector<1x512xf32>
    %cst_18 = arith.constant dense<0.000000e+00> : vector<512xf32>
    %86 = vector.multi_reduction <add>, %83, %cst_18 [0] : vector<8x512xf32> to vector<512xf32>
    %87 = vector.shape_cast %86 : vector<512xf32> to vector<1x512xf32>
    %cst_19 = arith.constant 8.000000e+00 : f32
    %88 = vector.broadcast %cst_19 : f32 to vector<1x512xf32>
    %89 = arith.divf %87, %88 : vector<1x512xf32>
    %90 = arith.mulf %83, %83 : vector<8x512xf32>
    %cst_20 = arith.constant dense<0.000000e+00> : vector<512xf32>
    %91 = vector.multi_reduction <add>, %90, %cst_20 [0] : vector<8x512xf32> to vector<512xf32>
    %92 = vector.shape_cast %91 : vector<512xf32> to vector<1x512xf32>
    %cst_21 = arith.constant 8.000000e+00 : f32
    %93 = vector.broadcast %cst_21 : f32 to vector<1x512xf32>
    %94 = arith.divf %92, %93 : vector<1x512xf32>
    %95 = arith.mulf %89, %89 : vector<1x512xf32>
    %96 = arith.subf %94, %95 : vector<1x512xf32>
    %cst_22 = arith.constant 0.000000e+00 : f32
    %97 = vector.broadcast %cst_22 : f32 to vector<1x512xf32>
    %98 = arith.maximumf %96, %97 : vector<1x512xf32>
    %cst_23 = arith.constant 9.99999974E-6 : f32
    %99 = vector.broadcast %cst_23 : f32 to vector<1x512xf32>
    %100 = arith.addf %98, %99 : vector<1x512xf32>
    %101 = math.rsqrt %100 : vector<1x512xf32>
    %102 = arith.mulf %101, %84 : vector<1x512xf32>
    %103 = arith.mulf %89, %102 : vector<1x512xf32>
    %104 = arith.subf %85, %103 : vector<1x512xf32>
    %105 = vector.broadcast %102 : vector<1x512xf32> to vector<8x512xf32>
    %106 = arith.mulf %83, %105 : vector<8x512xf32>
    %107 = vector.broadcast %104 : vector<1x512xf32> to vector<8x512xf32>
    %108 = arith.addf %106, %107 : vector<8x512xf32>
    %109 = arith.truncf %108 : vector<8x512xf32> to vector<8x512xbf16>
    %c0_24 = arith.constant 0 : index
    %c0_25 = arith.constant 0 : index
    %110 = vector.load %arg2[%c0_24, %c0_25] : memref<512x512xbf16, #tpu.memory_space<vmem>>, vector<512x512xbf16>
    %cst_26 = arith.constant dense<0.000000e+00> : vector<8x512xf32>
    %111 = tpu.matmul %109, %110, %cst_26 {dimension_numbers = #tpu.dot_dimension_numbers<[1], [0], [0], [1], [0, 0, 1, 1], [], []>} : vector<8x512xbf16>, vector<512x512xbf16>, vector<8x512xf32> -> vector<8x512xf32>
    %c4_27 = arith.constant 4 : index
    %c0_28 = arith.constant 0 : index
    %112 = vector.load %arg3[%c4_27, %c0_28] : memref<8x512xf32, #tpu.memory_space<vmem>>, vector<1x512xf32>
    %113 = vector.broadcast %112 : vector<1x512xf32> to vector<8x512xf32>
    %114 = arith.addf %111, %113 : vector<8x512xf32>
    %cst_29 = arith.constant 5.000000e-01 : f32
    %115 = vector.broadcast %cst_29 : f32 to vector<8x512xf32>
    %116 = arith.mulf %115, %114 : vector<8x512xf32>
    %cst_30 = arith.constant 0.707106769 : f32
    %117 = vector.broadcast %cst_30 : f32 to vector<8x512xf32>
    %118 = arith.mulf %114, %117 : vector<8x512xf32>
    %119 = math.erf %118 : vector<8x512xf32>
    %cst_31 = arith.constant 1.000000e+00 : f32
    %120 = vector.broadcast %cst_31 : f32 to vector<8x512xf32>
    %121 = arith.addf %120, %119 : vector<8x512xf32>
    %122 = arith.mulf %116, %121 : vector<8x512xf32>
    %c2_32 = arith.constant 2 : index
    %c0_33 = arith.constant 0 : index
    %123 = vector.load %arg3[%c2_32, %c0_33] : memref<8x512xf32, #tpu.memory_space<vmem>>, vector<1x512xf32>
    %c3_34 = arith.constant 3 : index
    %c0_35 = arith.constant 0 : index
    %124 = vector.load %arg3[%c3_34, %c0_35] : memref<8x512xf32, #tpu.memory_space<vmem>>, vector<1x512xf32>
    %cst_36 = arith.constant dense<0.000000e+00> : vector<512xf32>
    %125 = vector.multi_reduction <add>, %122, %cst_36 [0] : vector<8x512xf32> to vector<512xf32>
    %126 = vector.shape_cast %125 : vector<512xf32> to vector<1x512xf32>
    %cst_37 = arith.constant 8.000000e+00 : f32
    %127 = vector.broadcast %cst_37 : f32 to vector<1x512xf32>
    %128 = arith.divf %126, %127 : vector<1x512xf32>
    %129 = arith.mulf %122, %122 : vector<8x512xf32>
    %cst_38 = arith.constant dense<0.000000e+00> : vector<512xf32>
    %130 = vector.multi_reduction <add>, %129, %cst_38 [0] : vector<8x512xf32> to vector<512xf32>
    %131 = vector.shape_cast %130 : vector<512xf32> to vector<1x512xf32>
    %cst_39 = arith.constant 8.000000e+00 : f32
    %132 = vector.broadcast %cst_39 : f32 to vector<1x512xf32>
    %133 = arith.divf %131, %132 : vector<1x512xf32>
    %134 = arith.mulf %128, %128 : vector<1x512xf32>
    %135 = arith.subf %133, %134 : vector<1x512xf32>
    %cst_40 = arith.constant 0.000000e+00 : f32
    %136 = vector.broadcast %cst_40 : f32 to vector<1x512xf32>
    %137 = arith.maximumf %135, %136 : vector<1x512xf32>
    %cst_41 = arith.constant 9.99999974E-6 : f32
    %138 = vector.broadcast %cst_41 : f32 to vector<1x512xf32>
    %139 = arith.addf %137, %138 : vector<1x512xf32>
    %140 = math.rsqrt %139 : vector<1x512xf32>
    %141 = arith.mulf %140, %123 : vector<1x512xf32>
    %142 = arith.mulf %128, %141 : vector<1x512xf32>
    %143 = arith.subf %124, %142 : vector<1x512xf32>
    %c5_42 = arith.constant 5 : index
    %c0_43 = arith.constant 0 : index
    %144 = vector.load %arg3[%c5_42, %c0_43] : memref<8x512xf32, #tpu.memory_space<vmem>>, vector<1x512xf32>
    %c6_44 = arith.constant 6 : index
    %c0_45 = arith.constant 0 : index
    %145 = vector.load %arg3[%c6_44, %c0_45] : memref<8x512xf32, #tpu.memory_space<vmem>>, vector<1x1xf32>
    %146 = arith.mulf %141, %144 : vector<1x512xf32>
    %147 = arith.mulf %143, %144 : vector<1x512xf32>
    %cst_46 = arith.constant dense<0.000000e+00> : vector<1xf32>
    %148 = vector.multi_reduction <add>, %147, %cst_46 [1] : vector<1x512xf32> to vector<1xf32>
    %149 = vector.shape_cast %148 : vector<1xf32> to vector<1x1xf32>
    %150 = arith.addf %149, %145 : vector<1x1xf32>
    %151 = vector.broadcast %146 : vector<1x512xf32> to vector<8x512xf32>
    %152 = arith.mulf %122, %151 : vector<8x512xf32>
    %cst_47 = arith.constant dense<0.000000e+00> : vector<8xf32>
    %153 = vector.multi_reduction <add>, %152, %cst_47 [1] : vector<8x512xf32> to vector<8xf32>
    %154 = vector.shape_cast %153 : vector<8xf32> to vector<8x1xf32>
    %155 = vector.broadcast %150 : vector<1x1xf32> to vector<8x1xf32>
    %156 = arith.addf %154, %155 : vector<8x1xf32>
    %c0_48 = arith.constant 0 : index
    %c0_49 = arith.constant 0 : index
    %157 = vector.load %arg4[%c0_48, %c0_49] : memref<8x1xf32, #tpu.memory_space<vmem>>, vector<8x1xf32>
    tpu.vector_store %arg4[%c0_48, %c0_49], %156 {strides = array<i32>} : memref<8x1xf32, #tpu.memory_space<vmem>>, vector<8x1xf32>,
    return
  }
}

</mosaic_0001>

<llo_original>
// kernel: value_network_forward.1
$region0: #{value_network_forward.1}
  #allocation0 [shape = 'u32[]', space=smem, size = 0x4, offset = 0x4, fixed_abs, tag = 'smem constant byte address 0x4 - core index']
  #allocation1 [shape = 'u32[72,128]{1,0:T(1,128)}', space=vmem, size = 0x9000, scoped, tag = 'internal scratch']
  %s0 = inlined_call_operand.vmem [shape: s32[8,1], index: 0, kind: input, shape index: {}]
  %s1 = inlined_call_operand.hbm [shape: f32[10,512], index: 1, kind: input, shape index: {}]
  %s2 = inlined_call_operand.hbm [shape: bf16[512,512], index: 2, kind: input, shape index: {}]
  %s3 = inlined_call_operand.hbm [shape: f32[8,512], index: 3, kind: input, shape index: {}]
  %s4 = inlined_call_operand.vmem [shape: f32[8,1], index: 4, kind: output, shape index: {}]
  %s5 = sld [smem:[#allocation0]]
  $region38: #{value_network_forward.1} parent=0
    _
  %s7 = ssub.s32 1, %s5
  %s8 = scalar_select 0, %s7, %s5
  $region1: #{value_network_forward.1} parent=0
    #allocation2 [shape = 'u8[32768]{0}', space=vmem, size = 0x8000, scoped, tag = 'input window, operand 1, single buffered']
    #allocation3 [shape = 's32[1]{0}', space=sflag, size = 0x4, scoped, tag = 'scoped memory for value_network_forward.1']
    #allocation4 [shape = 'u8[524288]{0}', space=vmem, size = 0x80000, scoped, tag = 'input window, operand 2, single buffered']
    #allocation5 [shape = 's32[1]{0}', space=sflag, size = 0x4, scoped, tag = 'scoped memory for value_network_forward.1']
    #allocation6 [shape = 'u8[16384]{0}', space=vmem, size = 0x4000, scoped, tag = 'input window, operand 3, single buffered']
    %9 = vsyncpa [#allocation3], 0
    %10 = vsyncpa [#allocation5], 0
    // Predicated region
    $region2: #{value_network_forward.1} parent=1 // pred_check
      _
    $region3: #{value_network_forward.1} parent=1 // pred_check_branch
      %12 = sbr.rel (0) target = $region5
    $region4: #{value_network_forward.1} parent=1 // pred_region
      _
    $region5: #{value_network_forward.1} parent=1 // pred_fallthru
      _
    // Predicated region
    $region6: #{value_network_forward.1} parent=1 // pred_check
      _
    $region7: #{value_network_forward.1} parent=1 // pred_check_branch
      %14 = sbr.rel (0) target = $region9
    $region8: #{value_network_forward.1} parent=1 // pred_region
      %16 = vsyncadd [#allocation3], 0
      %s17 = sshll.u32 %s1, 4
      %s18 = int_to_ptr.hbm [resolvable:$true] %s17
      %s19 = sshll.u32 [#allocation2], 4
      %s20 = int_to_ptr.vmem [resolvable:$true] %s19
      %25 = dma.hbm_to_vmem [thread:$0]  %s18, 1024, %s20, [#allocation3], 512, 512, 32
    $region9: #{value_network_forward.1} parent=1 // pred_fallthru
      _
    // Predicated region
    $region10: #{value_network_forward.1} parent=1 // pred_check
      _
    $region11: #{value_network_forward.1} parent=1 // pred_check_branch
      %27 = sbr.rel (0) target = $region13
    $region12: #{value_network_forward.1} parent=1 // pred_region
      %29 = vsyncadd [#allocation5], 0
      %s30 = sshll.u32 %s2, 4
      %s31 = int_to_ptr.hbm [resolvable:$true] %s30
      %s32 = sshll.u32 [#allocation4], 4
      %s33 = int_to_ptr.vmem [resolvable:$true] %s32
      %38 = dma.hbm_to_vmem [thread:$0]  %s31, 16384, %s33, [#allocation5], 256, 256, 16
    $region13: #{value_network_forward.1} parent=1 // pred_fallthru
      _
    // Predicated region
    $region14: #{value_network_forward.1} parent=1 // pred_check
      _
    $region15: #{value_network_forward.1} parent=1 // pred_check_branch
      %40 = sbr.rel (0) target = $region17
    $region16: #{value_network_forward.1} parent=1 // pred_region
      %42 = vsyncadd [#allocation5], 0
      %s44 = sshll.u32 %s3, 4
      %s45 = int_to_ptr.hbm [resolvable:$true] %s44
      %s46 = sshll.u32 [#allocation6], 4
      %s47 = int_to_ptr.vmem [resolvable:$true] %s46
      %49 = dma.hbm_to_vmem [thread:$0]  %s45, 512, %s47, [#allocation5]
    $region17: #{value_network_forward.1} parent=1 // pred_fallthru
      _
    // Predicated region
    $region18: #{value_network_forward.1} parent=1 // pred_check
      _
    $region19: #{value_network_forward.1} parent=1 // pred_check_branch
      %51 = sbr.rel (0) target = $region21
    $region20: #{value_network_forward.1} parent=1 // pred_region
      %53 = dma.done [#allocation3], 1024
    $region21: #{value_network_forward.1} parent=1 // pred_fallthru
      _
    // Predicated region
    $region22: #{value_network_forward.1} parent=1 // pred_check
      _
    $region23: #{value_network_forward.1} parent=1 // pred_check_branch
      %55 = sbr.rel (0) target = $region25
    $region24: #{value_network_forward.1} parent=1 // pred_region
      %57 = dma.done [#allocation5], 16384
    $region25: #{value_network_forward.1} parent=1 // pred_fallthru
      _
    // Predicated region
    $region26: #{value_network_forward.1} parent=1 // pred_check
      _
    $region27: #{value_network_forward.1} parent=1 // pred_check_branch
      %59 = sbr.rel (0) target = $region29
    $region28: #{value_network_forward.1} parent=1 // pred_region
      %61 = dma.done [#allocation5], 512
    $region29: #{value_network_forward.1} parent=1 // pred_fallthru
      _
    %v62 = vld [vmem:[%s0] sm:$0xff]
    %v63 = vld [vmem:[#allocation2] ss:$8 sm:$0xf]
    %v65 = vperm.slane %v63, 0
    %v66 = vperm.slane %v63, 1
    %v67 = vperm.slane %v63, 2
    %v68 = vperm.slane %v63, 3
    %vm73 = vcmp.eq.s32.totalorder %v62, 1
    %s74 = scalar_lea.vmem [#allocation2], 1
    %v75 = vld [vmem:[%s74] ss:$8 sm:$0xf]
    %v76 = vsel %vm73, 1, 0
    %77 = vset.pattern.permute.xlu0 0
    %78 = vperm.xlu0 %77, %v76
    %v79 = vpop.permute.xlu0 %78
    %vm80 = vcmp.eq.s32.totalorder %v79, 1
    %v82 = vperm.slane %v75, 0
    %v83 = vperm.slane %v75, 1
    %v84 = vperm.slane %v75, 2
    %v85 = vperm.slane %v75, 3
    %v90 = vsel %vm80, %v82, %v65
    %v91 = vsel %vm80, %v83, %v66
    %v92 = vsel %vm80, %v84, %v67
    %v93 = vsel %vm80, %v85, %v68
    %vm94 = vcmp.eq.s32.totalorder %v62, 2
    %s95 = scalar_lea.vmem [#allocation2], 2
    %v96 = vld [vmem:[%s95] ss:$8 sm:$0xf]
    %v97 = vsel %vm94, 1, 0
    %98 = vset.pattern.permute.xlu0 0
    %99 = vperm.xlu0 %98, %v97
    %v100 = vpop.permute.xlu0 %99
    %vm101 = vcmp.eq.s32.totalorder %v100, 1
    %v103 = vperm.slane %v96, 0
    %v104 = vperm.slane %v96, 1
    %v105 = vperm.slane %v96, 2
    %v106 = vperm.slane %v96, 3
    %v111 = vsel %vm101, %v103, %v90
    %v112 = vsel %vm101, %v104, %v91
    %v113 = vsel %vm101, %v105, %v92
    %v114 = vsel %vm101, %v106, %v93
    %vm115 = vcmp.eq.s32.totalorder %v62, 3
    %s116 = scalar_lea.vmem [#allocation2], 3
    %v117 = vld [vmem:[%s116] ss:$8 sm:$0xf]
    %v118 = vsel %vm115, 1, 0
    %119 = vset.pattern.permute.xlu0 0
    %120 = vperm.xlu0 %119, %v118
    %v121 = vpop.permute.xlu0 %120
    %vm122 = vcmp.eq.s32.totalorder %v121, 1
    %v124 = vperm.slane %v117, 0
    %v125 = vperm.slane %v117, 1
    %v126 = vperm.slane %v117, 2
    %v127 = vperm.slane %v117, 3
    %v132 = vsel %vm122, %v124, %v111
    %v133 = vsel %vm122, %v125, %v112
    %v134 = vsel %vm122, %v126, %v113
    %v135 = vsel %vm122, %v127, %v114
    %vm136 = vcmp.eq.s32.totalorder %v62, 4
    %s137 = scalar_lea.vmem [#allocation2], 4
    %v138 = vld [vmem:[%s137] ss:$8 sm:$0xf]
    %v139 = vsel %vm136, 1, 0
    %140 = vset.pattern.permute.xlu0 0
    %141 = vperm.xlu0 %140, %v139
    %v142 = vpop.permute.xlu0 %141
    %vm143 = vcmp.eq.s32.totalorder %v142, 1
    %v145 = vperm.slane %v138, 0
    %v146 = vperm.slane %v138, 1
    %v147 = vperm.slane %v138, 2
    %v148 = vperm.slane %v138, 3
    %v153 = vsel %vm143, %v145, %v132
    %v154 = vsel %vm143, %v146, %v133
    %v155 = vsel %vm143, %v147, %v134
    %v156 = vsel %vm143, %v148, %v135
    %vm157 = vcmp.eq.s32.totalorder %v62, 5
    %s158 = scalar_lea.vmem [#allocation2], 5
    %v159 = vld [vmem:[%s158] ss:$8 sm:$0xf]
    %v160 = vsel %vm157, 1, 0
    %161 = vset.pattern.permute.xlu0 0
    %162 = vperm.xlu0 %161, %v160
    %v163 = vpop.permute.xlu0 %162
    %vm164 = vcmp.eq.s32.totalorder %v163, 1
    %v166 = vperm.slane %v159, 0
    %v167 = vperm.slane %v159, 1
    %v168 = vperm.slane %v159, 2
    %v169 = vperm.slane %v159, 3
    %v174 = vsel %vm164, %v166, %v153
    %v175 = vsel %vm164, %v167, %v154
    %v176 = vsel %vm164, %v168, %v155
    %v177 = vsel %vm164, %v169, %v156
    %vm178 = vcmp.eq.s32.totalorder %v62, 6
    %s179 = scalar_lea.vmem [#allocation2], 6
    %v180 = vld [vmem:[%s179] ss:$8 sm:$0xf]
    %v181 = vsel %vm178, 1, 0
    %182 = vset.pattern.permute.xlu0 0
    %183 = vperm.xlu0 %182, %v181
    %v184 = vpop.permute.xlu0 %183
    %vm185 = vcmp.eq.s32.totalorder %v184, 1
    %v187 = vperm.slane %v180, 0
    %v188 = vperm.slane %v180, 1
    %v189 = vperm.slane %v180, 2
    %v190 = vperm.slane %v180, 3
    %v195 = vsel %vm185, %v187, %v174
    %v196 = vsel %vm185, %v188, %v175
    %v197 = vsel %vm185, %v189, %v176
    %v198 = vsel %vm185, %v190, %v177
    %vm199 = vcmp.eq.s32.totalorder %v62, 7
    %s200 = scalar_lea.vmem [#allocation2], 7
    %v201 = vld [vmem:[%s200] ss:$8 sm:$0xf]
    %v202 = vsel %vm199, 1, 0
    %203 = vset.pattern.permute.xlu0 0
    %204 = vperm.xlu0 %203, %v202
    %v205 = vpop.permute.xlu0 %204
    %vm206 = vcmp.eq.s32.totalorder %v205, 1
    %v208 = vperm.slane %v201, 0
    %v209 = vperm.slane %v201, 1
    %v210 = vperm.slane %v201, 2
    %v211 = vperm.slane %v201, 3
    %v216 = vsel %vm206, %v208, %v195
    %v217 = vsel %vm206, %v209, %v196
    %v218 = vsel %vm206, %v210, %v197
    %v219 = vsel %vm206, %v211, %v198
    %vm220 = vcmp.eq.s32.totalorder %v62, 8
    %s221 = scalar_lea.vmem [#allocation2], 32
    %v222 = vld [vmem:[%s221] ss:$8 sm:$0xf]
    %v223 = vsel %vm220, 1, 0
    %224 = vset.pattern.permute.xlu0 0
    %225 = vperm.xlu0 %224, %v223
    %v226 = vpop.permute.xlu0 %225
    %vm227 = vcmp.eq.s32.totalorder %v226, 1
    %v229 = vperm.slane %v222, 0
    %v230 = vperm.slane %v222, 1
    %v231 = vperm.slane %v222, 2
    %v232 = vperm.slane %v222, 3
    %v237 = vsel %vm227, %v229, %v216
    %v238 = vsel %vm227, %v230, %v217
    %v239 = vsel %vm227, %v231, %v218
    %v240 = vsel %vm227, %v232, %v219
    %vm241 = vcmp.eq.s32.totalorder %v62, 9
    %s242 = scalar_lea.vmem [#allocation2], 33
    %v243 = vld [vmem:[%s242] ss:$8 sm:$0xf]
    %v244 = vsel %vm241, 1, 0
    %245 = vset.pattern.permute.xlu0 0
    %246 = vperm.xlu0 %245, %v244
    %v247 = vpop.permute.xlu0 %246
    %vm248 = vcmp.eq.s32.totalorder %v247, 1
    %v250 = vperm.slane %v243, 0
    %v251 = vperm.slane %v243, 1
    %v252 = vperm.slane %v243, 2
    %v253 = vperm.slane %v243, 3
    %v258 = vsel %vm248, %v250, %v237
    %v259 = vsel %vm248, %v251, %v238
    %v260 = vsel %vm248, %v252, %v239
    %v261 = vsel %vm248, %v253, %v240
    %v262 = vmul.f32 %v258, 0.5
    %v263 = vmul.f32 %v259, 0.5
    %v264 = vmul.f32 %v260, 0.5
    %v265 = vmul.f32 %v261, 0.5
    %v266 = vmul.f32 %v258, 0.70710677
    %v267 = vmul.f32 %v259, 0.70710677
    %v268 = vmul.f32 %v260, 0.70710677
    %v269 = vmul.f32 %v261, 0.70710677
    %v270 = vmul.f32 %v266, %v266
    %v271 = vmin.f32 16.0, %v270
    %v272 = vmul.f32 %v271, 2.1237322e-06
    %v273 = vadd.f32 %v272, 0.00028619796
    %v274 = vmul.f32 %v271, %v273
    %v275 = vadd.f32 %v274, 0.0036580483
    %v276 = vmul.f32 %v271, %v275
    %v277 = vadd.f32 %v276, 0.05243302
    %v278 = vmul.f32 %v271, %v277
    %v279 = vadd.f32 %v278, 0.18741608
    %v280 = vmul.f32 %v271, %v279
    %v281 = vadd.f32 %v280, 1.1283791
    %v282 = vmul.f32 %v266, %v281
    %v283 = vmul.f32 %v271, 3.8918573e-05
    %v284 = vadd.f32 %v283, 0.001143296
    %v285 = vmul.f32 %v271, %v284
    %v286 = vadd.f32 %v285, 0.014752088
    %v287 = vmul.f32 %v271, %v286
    %v288 = vadd.f32 %v287, 0.112945676
    %v289 = vmul.f32 %v271, %v288
    %v290 = vadd.f32 %v289, 0.4994258
    %v291 = vmul.f32 %v271, %v290
    %v292 = vadd.f32 %v291, 1.0
    %v293 = vrcp.pop %v292
    %v294 = vmul.f32 %v292, %v293
    %v295 = vsub.f32 1.0, %v294
    %v296 = vmul.f32 %v293, %v295
    %v297 = vadd.f32 %v293, %v296
    %vm298 = vweird.f32 %v292
    %vm299 = vweird.f32 %v293
    %vm300 = vmor %vm298, %vm299
    %v301 = vsel %vm300, %v293, %v297
    %v302 = vand.u32 2147483647, %v292
    %vm303 = vcmp.eq.f32.partialorder %v302, 8.507059e+37
    %v304 = vand.u32 %v292, 2147483648
    %v305 = vor.u32 1.1754944e-38, %v304
    %v306 = vsel %vm303, %v305, %v301
    %v307 = vmul.f32 %v282, %v306
    %v308 = vmin.f32 %v307, 1.0
    %v309 = vmax.f32 %v308, -1.0
    %v310 = vmul.f32 %v267, %v267
    %v311 = vmin.f32 16.0, %v310
    %v312 = vmul.f32 %v311, 2.1237322e-06
    %v313 = vadd.f32 %v312, 0.00028619796
    %v314 = vmul.f32 %v311, %v313
    %v315 = vadd.f32 %v314, 0.0036580483
    %v316 = vmul.f32 %v311, %v315
    %v317 = vadd.f32 %v316, 0.05243302
    %v318 = vmul.f32 %v311, %v317
    %v319 = vadd.f32 %v318, 0.18741608
    %v320 = vmul.f32 %v311, %v319
    %v321 = vadd.f32 %v320, 1.1283791
    %v322 = vmul.f32 %v267, %v321
    %v323 = vmul.f32 %v311, 3.8918573e-05
    %v324 = vadd.f32 %v323, 0.001143296
    %v325 = vmul.f32 %v311, %v324
    %v326 = vadd.f32 %v325, 0.014752088
    %v327 = vmul.f32 %v311, %v326
    %v328 = vadd.f32 %v327, 0.112945676
    %v329 = vmul.f32 %v311, %v328
    %v330 = vadd.f32 %v329, 0.4994258
    %v331 = vmul.f32 %v311, %v330
    %v332 = vadd.f32 %v331, 1.0
    %v333 = vrcp.pop %v332
    %v334 = vmul.f32 %v332, %v333
    %v335 = vsub.f32 1.0, %v334
    %v336 = vmul.f32 %v333, %v335
    %v337 = vadd.f32 %v333, %v336
    %vm338 = vweird.f32 %v332
    %vm339 = vweird.f32 %v333
    %vm340 = vmor %vm338, %vm339
    %v341 = vsel %vm340, %v333, %v337
    %v342 = vand.u32 2147483647, %v332
    %vm343 = vcmp.eq.f32.partialorder %v342, 8.507059e+37
    %v344 = vand.u32 %v332, 2147483648
    %v345 = vor.u32 1.1754944e-38, %v344
    %v346 = vsel %vm343, %v345, %v341
    %v347 = vmul.f32 %v322, %v346
    %v348 = vmin.f32 %v347, 1.0
    %v349 = vmax.f32 %v348, -1.0
    %v350 = vmul.f32 %v268, %v268
    %v351 = vmin.f32 16.0, %v350
    %v352 = vmul.f32 %v351, 2.1237322e-06
    %v353 = vadd.f32 %v352, 0.00028619796
    %v354 = vmul.f32 %v351, %v353
    %v355 = vadd.f32 %v354, 0.0036580483
    %v356 = vmul.f32 %v351, %v355
    %v357 = vadd.f32 %v356, 0.05243302
    %v358 = vmul.f32 %v351, %v357
    %v359 = vadd.f32 %v358, 0.18741608
    %v360 = vmul.f32 %v351, %v359
    %v361 = vadd.f32 %v360, 1.1283791
    %v362 = vmul.f32 %v268, %v361
    %v363 = vmul.f32 %v351, 3.8918573e-05
    %v364 = vadd.f32 %v363, 0.001143296
    %v365 = vmul.f32 %v351, %v364
    %v366 = vadd.f32 %v365, 0.014752088
    %v367 = vmul.f32 %v351, %v366
    %v368 = vadd.f32 %v367, 0.112945676
    %v369 = vmul.f32 %v351, %v368
    %v370 = vadd.f32 %v369, 0.4994258
    %v371 = vmul.f32 %v351, %v370
    %v372 = vadd.f32 %v371, 1.0
    %v373 = vrcp.pop %v372
    %v374 = vmul.f32 %v372, %v373
    %v375 = vsub.f32 1.0, %v374
    %v376 = vmul.f32 %v373, %v375
    %v377 = vadd.f32 %v373, %v376
    %vm378 = vweird.f32 %v372
    %vm379 = vweird.f32 %v373
    %vm380 = vmor %vm378, %vm379
    %v381 = vsel %vm380, %v373, %v377
    %v382 = vand.u32 2147483647, %v372
    %vm383 = vcmp.eq.f32.partialorder %v382, 8.507059e+37
    %v384 = vand.u32 %v372, 2147483648
    %v385 = vor.u32 1.1754944e-38, %v384
    %v386 = vsel %vm383, %v385, %v381
    %v387 = vmul.f32 %v362, %v386
    %v388 = vmin.f32 %v387, 1.0
    %v389 = vmax.f32 %v388, -1.0
    %v390 = vmul.f32 %v269, %v269
    %v391 = vmin.f32 16.0, %v390
    %v392 = vmul.f32 %v391, 2.1237322e-06
    %v393 = vadd.f32 %v392, 0.00028619796
    %v394 = vmul.f32 %v391, %v393
    %v395 = vadd.f32 %v394, 0.0036580483
    %v396 = vmul.f32 %v391, %v395
    %v397 = vadd.f32 %v396, 0.05243302
    %v398 = vmul.f32 %v391, %v397
    %v399 = vadd.f32 %v398, 0.18741608
    %v400 = vmul.f32 %v391, %v399
    %v401 = vadd.f32 %v400, 1.1283791
    %v402 = vmul.f32 %v269, %v401
    %v403 = vmul.f32 %v391, 3.8918573e-05
    %v404 = vadd.f32 %v403, 0.001143296
    %v405 = vmul.f32 %v391, %v404
    %v406 = vadd.f32 %v405, 0.014752088
    %v407 = vmul.f32 %v391, %v406
    %v408 = vadd.f32 %v407, 0.112945676
    %v409 = vmul.f32 %v391, %v408
    %v410 = vadd.f32 %v409, 0.4994258
    %v411 = vmul.f32 %v391, %v410
    %v412 = vadd.f32 %v411, 1.0
    %v413 = vrcp.pop %v412
    %v414 = vmul.f32 %v412, %v413
    %v415 = vsub.f32 1.0, %v414
    %v416 = vmul.f32 %v413, %v415
    %v417 = vadd.f32 %v413, %v416
    %vm418 = vweird.f32 %v412
    %vm419 = vweird.f32 %v413
    %vm420 = vmor %vm418, %vm419
    %v421 = vsel %vm420, %v413, %v417
    %v422 = vand.u32 2147483647, %v412
    %vm423 = vcmp.eq.f32.partialorder %v422, 8.507059e+37
    %v424 = vand.u32 %v412, 2147483648
    %v425 = vor.u32 1.1754944e-38, %v424
    %v426 = vsel %vm423, %v425, %v421
    %v427 = vmul.f32 %v402, %v426
    %v428 = vmin.f32 %v427, 1.0
    %v429 = vmax.f32 %v428, -1.0
    %v430 = vadd.f32 %v309, 1.0
    %v431 = vadd.f32 %v349, 1.0
    %v432 = vadd.f32 %v389, 1.0
    %v433 = vadd.f32 %v429, 1.0
    %v434 = vmul.f32 %v262, %v430
    %v435 = vmul.f32 %v263, %v431
    %v436 = vmul.f32 %v264, %v432
    %v437 = vmul.f32 %v265, %v433
    %v438 = vld [vmem:[#allocation6] ss:$8 sm:$0xf]
    %s439 = scalar_lea.vmem [#allocation6], 1
    %v440 = vld [vmem:[%s439] ss:$8 sm:$0xf]
    %v441 = vrot.slane %v434, 4
    %v442 = vadd.f32 %v434, %v441
    %v443 = vrot.slane %v442, 2
    %v444 = vadd.f32 %v442, %v443
    %v445 = vrot.slane %v444, 1
    %v446 = vadd.f32 %v444, %v445
    %v447 = vrot.slane %v435, 4
    %v448 = vadd.f32 %v435, %v447
    %v449 = vrot.slane %v448, 2
    %v450 = vadd.f32 %v448, %v449
    %v451 = vrot.slane %v450, 1
    %v452 = vadd.f32 %v450, %v451
    %v453 = vrot.slane %v436, 4
    %v454 = vadd.f32 %v436, %v453
    %v455 = vrot.slane %v454, 2
    %v456 = vadd.f32 %v454, %v455
    %v457 = vrot.slane %v456, 1
    %v458 = vadd.f32 %v456, %v457
    %v459 = vrot.slane %v437, 4
    %v460 = vadd.f32 %v437, %v459
    %v461 = vrot.slane %v460, 2
    %v462 = vadd.f32 %v460, %v461
    %v463 = vrot.slane %v462, 1
    %v464 = vadd.f32 %v462, %v463
    %v465 = vrcp.pop 8.0
    %v466 = vmul.f32 8.0, %v465
    %v467 = vsub.f32 1.0, %v466
    %v468 = vmul.f32 %v465, %v467
    %v469 = vadd.f32 %v465, %v468
    %vm470 = vweird.f32 %v465
    %v471 = vsel %vm470, %v465, %v469
    %v472 = vmul.f32 %v446, %v471
    %v473 = vmul.f32 %v452, %v471
    %v474 = vmul.f32 %v458, %v471
    %v475 = vmul.f32 %v464, %v471
    %v476 = vmul.f32 %v434, %v434
    %v477 = vmul.f32 %v435, %v435
    %v478 = vmul.f32 %v436, %v436
    %v479 = vmul.f32 %v437, %v437
    %v480 = vrot.slane %v476, 4
    %v481 = vadd.f32 %v476, %v480
    %v482 = vrot.slane %v481, 2
    %v483 = vadd.f32 %v481, %v482
    %v484 = vrot.slane %v483, 1
    %v485 = vadd.f32 %v483, %v484
    %v486 = vrot.slane %v477, 4
    %v487 = vadd.f32 %v477, %v486
    %v488 = vrot.slane %v487, 2
    %v489 = vadd.f32 %v487, %v488
    %v490 = vrot.slane %v489, 1
    %v491 = vadd.f32 %v489, %v490
    %v492 = vrot.slane %v478, 4
    %v493 = vadd.f32 %v478, %v492
    %v494 = vrot.slane %v493, 2
    %v495 = vadd.f32 %v493, %v494
    %v496 = vrot.slane %v495, 1
    %v497 = vadd.f32 %v495, %v496
    %v498 = vrot.slane %v479, 4
    %v499 = vadd.f32 %v479, %v498
    %v500 = vrot.slane %v499, 2
    %v501 = vadd.f32 %v499, %v500
    %v502 = vrot.slane %v501, 1
    %v503 = vadd.f32 %v501, %v502
    %v504 = vmul.f32 %v485, %v471
    %v505 = vmul.f32 %v491, %v471
    %v506 = vmul.f32 %v497, %v471
    %v507 = vmul.f32 %v503, %v471
    %v508 = vmul.f32 %v472, %v472
    %v509 = vmul.f32 %v473, %v473
    %v510 = vmul.f32 %v474, %v474
    %v511 = vmul.f32 %v475, %v475
    %v512 = vsub.f32 %v504, %v508
    %v513 = vsub.f32 %v505, %v509
    %v514 = vsub.f32 %v506, %v510
    %v515 = vsub.f32 %v507, %v511
    %v516 = vmax.f32 %v512, 0.0
    %v517 = vmax.f32 %v513, 0.0
    %v518 = vmax.f32 %v514, 0.0
    %v519 = vmax.f32 %v515, 0.0
    %v520 = vadd.f32 %v516, 1e-05
    %v521 = vadd.f32 %v517, 1e-05
    %v522 = vadd.f32 %v518, 1e-05
    %v523 = vadd.f32 %v519, 1e-05
    %v524 = vrsqrt.pop %v520
    %v525 = vmul.f32 %v524, %v520
    %v526 = vmul.f32 %v525, %v524
    %v527 = vmul.f32 0.5, %v526
    %v528 = vsub.f32 1.5, %v527
    %v529 = vmul.f32 %v524, %v528
    %vm530 = vweird.f32 %v520
    %vm531 = vweird.f32 %v524
    %vm532 = vmor %vm530, %vm531
    %v533 = vsel %vm532, %v524, %v529
    %v534 = vrsqrt.pop %v521
    %v535 = vmul.f32 %v534, %v521
    %v536 = vmul.f32 %v535, %v534
    %v537 = vmul.f32 0.5, %v536
    %v538 = vsub.f32 1.5, %v537
    %v539 = vmul.f32 %v534, %v538
    %vm540 = vweird.f32 %v521
    %vm541 = vweird.f32 %v534
    %vm542 = vmor %vm540, %vm541
    %v543 = vsel %vm542, %v534, %v539
    %v544 = vrsqrt.pop %v522
    %v545 = vmul.f32 %v544, %v522
    %v546 = vmul.f32 %v545, %v544
    %v547 = vmul.f32 0.5, %v546
    %v548 = vsub.f32 1.5, %v547
    %v549 = vmul.f32 %v544, %v548
    %vm550 = vweird.f32 %v522
    %vm551 = vweird.f32 %v544
    %vm552 = vmor %vm550, %vm551
    %v553 = vsel %vm552, %v544, %v549
    %v554 = vrsqrt.pop %v523
    %v555 = vmul.f32 %v554, %v523
    %v556 = vmul.f32 %v555, %v554
    %v557 = vmul.f32 0.5, %v556
    %v558 = vsub.f32 1.5, %v557
    %v559 = vmul.f32 %v554, %v558
    %vm560 = vweird.f32 %v523
    %vm561 = vweird.f32 %v554
    %vm562 = vmor %vm560, %vm561
    %v563 = vsel %vm562, %v554, %v559
    %v565 = vperm.slane %v438, 0
    %v566 = vperm.slane %v438, 1
    %v567 = vperm.slane %v438, 2
    %v568 = vperm.slane %v438, 3
    %v573 = vmul.f32 %v533, %v565
    %v574 = vmul.f32 %v543, %v566
    %v575 = vmul.f32 %v553, %v567
    %v576 = vmul.f32 %v563, %v568
    %v577 = vmul.f32 %v472, %v573
    %v578 = vmul.f32 %v473, %v574
    %v579 = vmul.f32 %v474, %v575
    %v580 = vmul.f32 %v475, %v576
    %v585 = vrot.slane %v578, 7
    %v586 = vrot.slane %v579, 6
    %v587 = vrot.slane %v580, 5
    %vm588 = vcmask 1040384
    %v589 = vsel %vm588, %v577, %v585
    %vm590 = vcmask 1042434
    %v591 = vsel %vm590, %v586, %v587
    %vm592 = vcmask 1041408
    %v593 = vsel %vm592, %v589, %v591
    %v595 = vsub.f32 %v440, %v593
    %v596 = vperm.slane %v573, 0
    %v597 = vperm.slane %v574, 0
    %v598 = vperm.slane %v575, 0
    %v599 = vperm.slane %v576, 0
    %v600 = vmul.f32 %v434, %v596
    %v601 = vmul.f32 %v435, %v597
    %v602 = vmul.f32 %v436, %v598
    %v603 = vmul.f32 %v437, %v599
    %v605 = vperm.slane %v595, 0
    %v606 = vperm.slane %v595, 1
    %v607 = vperm.slane %v595, 2
    %v608 = vperm.slane %v595, 3
    %v613 = vadd.f32 %v600, %v605
    %v614 = vadd.f32 %v601, %v606
    %v615 = vadd.f32 %v602, %v607
    %v616 = vadd.f32 %v603, %v608
    %v617 = vpack.c.bf16 %v613, %v613
    %v618 = vpack.c.bf16 %v614, %v614
    %v619 = vpack.c.bf16 %v615, %v615
    %v620 = vpack.c.bf16 %v616, %v616
    %v621 = vld [vmem:[#allocation4] sm:$0xff]
    %v622 = vld [vmem:[#allocation4 + $0x8] sm:$0xff]
    %v623 = vld [vmem:[#allocation4 + $0x10] sm:$0xff]
    %v624 = vld [vmem:[#allocation4 + $0x18] sm:$0xff]
    %v625 = vld [vmem:[#allocation4 + $0x20] sm:$0xff]
    %v626 = vld [vmem:[#allocation4 + $0x28] sm:$0xff]
    %v627 = vld [vmem:[#allocation4 + $0x30] sm:$0xff]
    %v628 = vld [vmem:[#allocation4 + $0x38] sm:$0xff]
    %v629 = vld [vmem:[#allocation4 + $0x40] sm:$0xff]
    %v630 = vld [vmem:[#allocation4 + $0x48] sm:$0xff]
    %v631 = vld [vmem:[#allocation4 + $0x50] sm:$0xff]
    %v632 = vld [vmem:[#allocation4 + $0x58] sm:$0xff]
    %v633 = vld [vmem:[#allocation4 + $0x60] sm:$0xff]
    %v634 = vld [vmem:[#allocation4 + $0x68] sm:$0xff]
    %v635 = vld [vmem:[#allocation4 + $0x70] sm:$0xff]
    %v636 = vld [vmem:[#allocation4 + $0x78] sm:$0xff]
    %v637 = vld [vmem:[#allocation4 + $0x80] sm:$0xff]
    %v638 = vld [vmem:[#allocation4 + $0x88] sm:$0xff]
    %v639 = vld [vmem:[#allocation4 + $0x90] sm:$0xff]
    %v640 = vld [vmem:[#allocation4 + $0x98] sm:$0xff]
    %v641 = vld [vmem:[#allocation4 + $0xa0] sm:$0xff]
    %v642 = vld [vmem:[#allocation4 + $0xa8] sm:$0xff]
    %v643 = vld [vmem:[#allocation4 + $0xb0] sm:$0xff]
    %v644 = vld [vmem:[#allocation4 + $0xb8] sm:$0xff]
    %v645 = vld [vmem:[#allocation4 + $0xc0] sm:$0xff]
    %v646 = vld [vmem:[#allocation4 + $0xc8] sm:$0xff]
    %v647 = vld [vmem:[#allocation4 + $0xd0] sm:$0xff]
    %v648 = vld [vmem:[#allocation4 + $0xd8] sm:$0xff]
    %v649 = vld [vmem:[#allocation4 + $0xe0] sm:$0xff]
    %v650 = vld [vmem:[#allocation4 + $0xe8] sm:$0xff]
    %v651 = vld [vmem:[#allocation4 + $0xf0] sm:$0xff]
    %v652 = vld [vmem:[#allocation4 + $0xf8] sm:$0xff]
    %v653 = vld [vmem:[#allocation4 + $0x100] sm:$0xff]
    %v654 = vld [vmem:[#allocation4 + $0x108] sm:$0xff]
    %v655 = vld [vmem:[#allocation4 + $0x110] sm:$0xff]
    %v656 = vld [vmem:[#allocation4 + $0x118] sm:$0xff]
    %v657 = vld [vmem:[#allocation4 + $0x120] sm:$0xff]
    %v658 = vld [vmem:[#allocation4 + $0x128] sm:$0xff]
    %v659 = vld [vmem:[#allocation4 + $0x130] sm:$0xff]
    %v660 = vld [vmem:[#allocation4 + $0x138] sm:$0xff]
    %v661 = vld [vmem:[#allocation4 + $0x140] sm:$0xff]
    %v662 = vld [vmem:[#allocation4 + $0x148] sm:$0xff]
    %v663 = vld [vmem:[#allocation4 + $0x150] sm:$0xff]
    %v664 = vld [vmem:[#allocation4 + $0x158] sm:$0xff]
    %v665 = vld [vmem:[#allocation4 + $0x160] sm:$0xff]
    %v666 = vld [vmem:[#allocation4 + $0x168] sm:$0xff]
    %v667 = vld [vmem:[#allocation4 + $0x170] sm:$0xff]
    %v668 = vld [vmem:[#allocation4 + $0x178] sm:$0xff]
    %v669 = vld [vmem:[#allocation4 + $0x180] sm:$0xff]
    %v670 = vld [vmem:[#allocation4 + $0x188] sm:$0xff]
    %v671 = vld [vmem:[#allocation4 + $0x190] sm:$0xff]
    %v672 = vld [vmem:[#allocation4 + $0x198] sm:$0xff]
    %v673 = vld [vmem:[#allocation4 + $0x1a0] sm:$0xff]
    %v674 = vld [vmem:[#allocation4 + $0x1a8] sm:$0xff]
    %v675 = vld [vmem:[#allocation4 + $0x1b0] sm:$0xff]
    %v676 = vld [vmem:[#allocation4 + $0x1b8] sm:$0xff]
    %v677 = vld [vmem:[#allocation4 + $0x1c0] sm:$0xff]
    %v678 = vld [vmem:[#allocation4 + $0x1c8] sm:$0xff]
    %v679 = vld [vmem:[#allocation4 + $0x1d0] sm:$0xff]
    %v680 = vld [vmem:[#allocation4 + $0x1d8] sm:$0xff]
    %v681 = vld [vmem:[#allocation4 + $0x1e0] sm:$0xff]
    %v682 = vld [vmem:[#allocation4 + $0x1e8] sm:$0xff]
    %v683 = vld [vmem:[#allocation4 + $0x1f0] sm:$0xff]
    %v684 = vld [vmem:[#allocation4 + $0x1f8] sm:$0xff]
    %v685 = vld [vmem:[#allocation4 + $0x200] sm:$0xff]
    %v686 = vld [vmem:[#allocation4 + $0x208] sm:$0xff]
    %v687 = vld [vmem:[#allocation4 + $0x210] sm:$0xff]
    %v688 = vld [vmem:[#allocation4 + $0x218] sm:$0xff]
    %v689 = vld [vmem:[#allocation4 + $0x220] sm:$0xff]
    %v690 = vld [vmem:[#allocation4 + $0x228] sm:$0xff]
    %v691 = vld [vmem:[#allocation4 + $0x230] sm:$0xff]
    %v692 = vld [vmem:[#allocation4 + $0x238] sm:$0xff]
    %v693 = vld [vmem:[#allocation4 + $0x240] sm:$0xff]
    %v694 = vld [vmem:[#allocation4 + $0x248] sm:$0xff]
    %v695 = vld [vmem:[#allocation4 + $0x250] sm:$0xff]
    %v696 = vld [vmem:[#allocation4 + $0x258] sm:$0xff]
    %v697 = vld [vmem:[#allocation4 + $0x260] sm:$0xff]
    %v698 = vld [vmem:[#allocation4 + $0x268] sm:$0xff]
    %v699 = vld [vmem:[#allocation4 + $0x270] sm:$0xff]
    %v700 = vld [vmem:[#allocation4 + $0x278] sm:$0xff]
    %v701 = vld [vmem:[#allocation4 + $0x280] sm:$0xff]
    %v702 = vld [vmem:[#allocation4 + $0x288] sm:$0xff]
    %v703 = vld [vmem:[#allocation4 + $0x290] sm:$0xff]
    %v704 = vld [vmem:[#allocation4 + $0x298] sm:$0xff]
    %v705 = vld [vmem:[#allocation4 + $0x2a0] sm:$0xff]
    %v706 = vld [vmem:[#allocation4 + $0x2a8] sm:$0xff]
    %v707 = vld [vmem:[#allocation4 + $0x2b0] sm:$0xff]
    %v708 = vld [vmem:[#allocation4 + $0x2b8] sm:$0xff]
    %v709 = vld [vmem:[#allocation4 + $0x2c0] sm:$0xff]
    %v710 = vld [vmem:[#allocation4 + $0x2c8] sm:$0xff]
    %v711 = vld [vmem:[#allocation4 + $0x2d0] sm:$0xff]
    %v712 = vld [vmem:[#allocation4 + $0x2d8] sm:$0xff]
    %v713 = vld [vmem:[#allocation4 + $0x2e0] sm:$0xff]
    %v714 = vld [vmem:[#allocation4 + $0x2e8] sm:$0xff]
    %v715 = vld [vmem:[#allocation4 + $0x2f0] sm:$0xff]
    %v716 = vld [vmem:[#allocation4 + $0x2f8] sm:$0xff]
    %v717 = vld [vmem:[#allocation4 + $0x300] sm:$0xff]
    %v718 = vld [vmem:[#allocation4 + $0x308] sm:$0xff]
    %v719 = vld [vmem:[#allocation4 + $0x310] sm:$0xff]
    %v720 = vld [vmem:[#allocation4 + $0x318] sm:$0xff]
    %v721 = vld [vmem:[#allocation4 + $0x320] sm:$0xff]
    %v722 = vld [vmem:[#allocation4 + $0x328] sm:$0xff]
    %v723 = vld [vmem:[#allocation4 + $0x330] sm:$0xff]
    %v724 = vld [vmem:[#allocation4 + $0x338] sm:$0xff]
    %v725 = vld [vmem:[#allocation4 + $0x340] sm:$0xff]
    %v726 = vld [vmem:[#allocation4 + $0x348] sm:$0xff]
    %v727 = vld [vmem:[#allocation4 + $0x350] sm:$0xff]
    %v728 = vld [vmem:[#allocation4 + $0x358] sm:$0xff]
    %v729 = vld [vmem:[#allocation4 + $0x360] sm:$0xff]
    %v730 = vld [vmem:[#allocation4 + $0x368] sm:$0xff]
    %v731 = vld [vmem:[#allocation4 + $0x370] sm:$0xff]
    %v732 = vld [vmem:[#allocation4 + $0x378] sm:$0xff]
    %v733 = vld [vmem:[#allocation4 + $0x380] sm:$0xff]
    %v734 = vld [vmem:[#allocation4 + $0x388] sm:$0xff]
    %v735 = vld [vmem:[#allocation4 + $0x390] sm:$0xff]
    %v736 = vld [vmem:[#allocation4 + $0x398] sm:$0xff]
    %v737 = vld [vmem:[#allocation4 + $0x3a0] sm:$0xff]
    %v738 = vld [vmem:[#allocation4 + $0x3a8] sm:$0xff]
    %v739 = vld [vmem:[#allocation4 + $0x3b0] sm:$0xff]
    %v740 = vld [vmem:[#allocation4 + $0x3b8] sm:$0xff]
    %v741 = vld [vmem:[#allocation4 + $0x3c0] sm:$0xff]
    %v742 = vld [vmem:[#allocation4 + $0x3c8] sm:$0xff]
    %v743 = vld [vmem:[#allocation4 + $0x3d0] sm:$0xff]
    %v744 = vld [vmem:[#allocation4 + $0x3d8] sm:$0xff]
    %v745 = vld [vmem:[#allocation4 + $0x3e0] sm:$0xff]
    %v746 = vld [vmem:[#allocation4 + $0x3e8] sm:$0xff]
    %v747 = vld [vmem:[#allocation4 + $0x3f0] sm:$0xff]
    %v748 = vld [vmem:[#allocation4 + $0x3f8] sm:$0xff]
    %s749 = scalar_lea.vmem [#allocation6], 4
    %v750 = vld [vmem:[%s749] ss:$8 sm:$0xf]
    %v752 = vperm.slane %v750, 0
    %v753 = vperm.slane %v750, 1
    %v754 = vperm.slane %v750, 2
    %v755 = vperm.slane %v750, 3
    %v888 = vunpack.c.l.b16 %v621
    %v889 = vunpack.c.h.b16 %v621
    %v890 = vunpack.c.l.b16 %v622
    %v891 = vunpack.c.h.b16 %v622
    %v892 = vunpack.c.l.b16 %v623
    %v893 = vunpack.c.h.b16 %v623
    %v894 = vunpack.c.l.b16 %v624
    %v895 = vunpack.c.h.b16 %v624
    %v896 = vunpack.c.l.b16 %v625
    %v897 = vunpack.c.h.b16 %v625
    %v898 = vunpack.c.l.b16 %v626
    %v899 = vunpack.c.h.b16 %v626
    %v900 = vunpack.c.l.b16 %v627
    %v901 = vunpack.c.h.b16 %v627
    %v902 = vunpack.c.l.b16 %v628
    %v903 = vunpack.c.h.b16 %v628
    %v904 = vunpack.c.l.b16 %v629
    %v905 = vunpack.c.h.b16 %v629
    %v906 = vunpack.c.l.b16 %v630
    %v907 = vunpack.c.h.b16 %v630
    %v908 = vunpack.c.l.b16 %v631
    %v909 = vunpack.c.h.b16 %v631
    %v910 = vunpack.c.l.b16 %v632
    %v911 = vunpack.c.h.b16 %v632
    %v912 = vunpack.c.l.b16 %v633
    %v913 = vunpack.c.h.b16 %v633
    %v914 = vunpack.c.l.b16 %v634
    %v915 = vunpack.c.h.b16 %v634
    %v916 = vunpack.c.l.b16 %v635
    %v917 = vunpack.c.h.b16 %v635
    %v918 = vunpack.c.l.b16 %v636
    %v919 = vunpack.c.h.b16 %v636
    %v920 = vunpack.c.l.b16 %v637
    %v921 = vunpack.c.h.b16 %v637
    %v922 = vunpack.c.l.b16 %v638
    %v923 = vunpack.c.h.b16 %v638
    %v924 = vunpack.c.l.b16 %v639
    %v925 = vunpack.c.h.b16 %v639
    %v926 = vunpack.c.l.b16 %v640
    %v927 = vunpack.c.h.b16 %v640
    %v928 = vunpack.c.l.b16 %v641
    %v929 = vunpack.c.h.b16 %v641
    %v930 = vunpack.c.l.b16 %v642
    %v931 = vunpack.c.h.b16 %v642
    %v932 = vunpack.c.l.b16 %v643
    %v933 = vunpack.c.h.b16 %v643
    %v934 = vunpack.c.l.b16 %v644
    %v935 = vunpack.c.h.b16 %v644
    %v936 = vunpack.c.l.b16 %v645
    %v937 = vunpack.c.h.b16 %v645
    %v938 = vunpack.c.l.b16 %v646
    %v939 = vunpack.c.h.b16 %v646
    %v940 = vunpack.c.l.b16 %v647
    %v941 = vunpack.c.h.b16 %v647
    %v942 = vunpack.c.l.b16 %v648
    %v943 = vunpack.c.h.b16 %v648
    %v944 = vunpack.c.l.b16 %v649
    %v945 = vunpack.c.h.b16 %v649
    %v946 = vunpack.c.l.b16 %v650
    %v947 = vunpack.c.h.b16 %v650
    %v948 = vunpack.c.l.b16 %v651
    %v949 = vunpack.c.h.b16 %v651
    %v950 = vunpack.c.l.b16 %v652
    %v951 = vunpack.c.h.b16 %v652
    %v952 = vunpack.c.l.b16 %v653
    %v953 = vunpack.c.h.b16 %v653
    %v954 = vunpack.c.l.b16 %v654
    %v955 = vunpack.c.h.b16 %v654
    %v956 = vunpack.c.l.b16 %v655
    %v957 = vunpack.c.h.b16 %v655
    %v958 = vunpack.c.l.b16 %v656
    %v959 = vunpack.c.h.b16 %v656
    %v960 = vunpack.c.l.b16 %v657
    %v961 = vunpack.c.h.b16 %v657
    %v962 = vunpack.c.l.b16 %v658
    %v963 = vunpack.c.h.b16 %v658
    %v964 = vunpack.c.l.b16 %v659
    %v965 = vunpack.c.h.b16 %v659
    %v966 = vunpack.c.l.b16 %v660
    %v967 = vunpack.c.h.b16 %v660
    %v968 = vunpack.c.l.b16 %v661
    %v969 = vunpack.c.h.b16 %v661
    %v970 = vunpack.c.l.b16 %v662
    %v971 = vunpack.c.h.b16 %v662
    %v972 = vunpack.c.l.b16 %v663
    %v973 = vunpack.c.h.b16 %v663
    %v974 = vunpack.c.l.b16 %v664
    %v975 = vunpack.c.h.b16 %v664
    %v976 = vunpack.c.l.b16 %v665
    %v977 = vunpack.c.h.b16 %v665
    %v978 = vunpack.c.l.b16 %v666
    %v979 = vunpack.c.h.b16 %v666
    %v980 = vunpack.c.l.b16 %v667
    %v981 = vunpack.c.h.b16 %v667
    %v982 = vunpack.c.l.b16 %v668
    %v983 = vunpack.c.h.b16 %v668
    %v984 = vunpack.c.l.b16 %v669
    %v985 = vunpack.c.h.b16 %v669
    %v986 = vunpack.c.l.b16 %v670
    %v987 = vunpack.c.h.b16 %v670
    %v988 = vunpack.c.l.b16 %v671
    %v989 = vunpack.c.h.b16 %v671
    %v990 = vunpack.c.l.b16 %v672
    %v991 = vunpack.c.h.b16 %v672
    %v992 = vunpack.c.l.b16 %v673
    %v993 = vunpack.c.h.b16 %v673
    %v994 = vunpack.c.l.b16 %v674
    %v995 = vunpack.c.h.b16 %v674
    %v996 = vunpack.c.l.b16 %v675
    %v997 = vunpack.c.h.b16 %v675
    %v998 = vunpack.c.l.b16 %v676
    %v999 = vunpack.c.h.b16 %v676
    %v1000 = vunpack.c.l.b16 %v677
    %v1001 = vunpack.c.h.b16 %v677
    %v1002 = vunpack.c.l.b16 %v678
    %v1003 = vunpack.c.h.b16 %v678
    %v1004 = vunpack.c.l.b16 %v679
    %v1005 = vunpack.c.h.b16 %v679
    %v1006 = vunpack.c.l.b16 %v680
    %v1007 = vunpack.c.h.b16 %v680
    %v1008 = vunpack.c.l.b16 %v681
    %v1009 = vunpack.c.h.b16 %v681
    %v1010 = vunpack.c.l.b16 %v682
    %v1011 = vunpack.c.h.b16 %v682
    %v1012 = vunpack.c.l.b16 %v683
    %v1013 = vunpack.c.h.b16 %v683
    %v1014 = vunpack.c.l.b16 %v684
    %v1015 = vunpack.c.h.b16 %v684
    %v1016 = vunpack.c.l.b16 %v685
    %v1017 = vunpack.c.h.b16 %v685
    %v1018 = vunpack.c.l.b16 %v686
    %v1019 = vunpack.c.h.b16 %v686
    %v1020 = vunpack.c.l.b16 %v687
    %v1021 = vunpack.c.h.b16 %v687
    %v1022 = vunpack.c.l.b16 %v688
    %v1023 = vunpack.c.h.b16 %v688
    %v1024 = vunpack.c.l.b16 %v689
    %v1025 = vunpack.c.h.b16 %v689
    %v1026 = vunpack.c.l.b16 %v690
    %v1027 = vunpack.c.h.b16 %v690
    %v1028 = vunpack.c.l.b16 %v691
    %v1029 = vunpack.c.h.b16 %v691
    %v1030 = vunpack.c.l.b16 %v692
    %v1031 = vunpack.c.h.b16 %v692
    %v1032 = vunpack.c.l.b16 %v693
    %v1033 = vunpack.c.h.b16 %v693
    %v1034 = vunpack.c.l.b16 %v694
    %v1035 = vunpack.c.h.b16 %v694
    %v1036 = vunpack.c.l.b16 %v695
    %v1037 = vunpack.c.h.b16 %v695
    %v1038 = vunpack.c.l.b16 %v696
    %v1039 = vunpack.c.h.b16 %v696
    %v1040 = vunpack.c.l.b16 %v697
    %v1041 = vunpack.c.h.b16 %v697
    %v1042 = vunpack.c.l.b16 %v698
    %v1043 = vunpack.c.h.b16 %v698
    %v1044 = vunpack.c.l.b16 %v699
    %v1045 = vunpack.c.h.b16 %v699
    %v1046 = vunpack.c.l.b16 %v700
    %v1047 = vunpack.c.h.b16 %v700
    %v1048 = vunpack.c.l.b16 %v701
    %v1049 = vunpack.c.h.b16 %v701
    %v1050 = vunpack.c.l.b16 %v702
    %v1051 = vunpack.c.h.b16 %v702
    %v1052 = vunpack.c.l.b16 %v703
    %v1053 = vunpack.c.h.b16 %v703
    %v1054 = vunpack.c.l.b16 %v704
    %v1055 = vunpack.c.h.b16 %v704
    %v1056 = vunpack.c.l.b16 %v705
    %v1057 = vunpack.c.h.b16 %v705
    %v1058 = vunpack.c.l.b16 %v706
    %v1059 = vunpack.c.h.b16 %v706
    %v1060 = vunpack.c.l.b16 %v707
    %v1061 = vunpack.c.h.b16 %v707
    %v1062 = vunpack.c.l.b16 %v708
    %v1063 = vunpack.c.h.b16 %v708
    %v1064 = vunpack.c.l.b16 %v709
    %v1065 = vunpack.c.h.b16 %v709
    %v1066 = vunpack.c.l.b16 %v710
    %v1067 = vunpack.c.h.b16 %v710
    %v1068 = vunpack.c.l.b16 %v711
    %v1069 = vunpack.c.h.b16 %v711
    %v1070 = vunpack.c.l.b16 %v712
    %v1071 = vunpack.c.h.b16 %v712
    %v1072 = vunpack.c.l.b16 %v713
    %v1073 = vunpack.c.h.b16 %v713
    %v1074 = vunpack.c.l.b16 %v714
    %v1075 = vunpack.c.h.b16 %v714
    %v1076 = vunpack.c.l.b16 %v715
    %v1077 = vunpack.c.h.b16 %v715
    %v1078 = vunpack.c.l.b16 %v716
    %v1079 = vunpack.c.h.b16 %v716
    %v1080 = vunpack.c.l.b16 %v717
    %v1081 = vunpack.c.h.b16 %v717
    %v1082 = vunpack.c.l.b16 %v718
    %v1083 = vunpack.c.h.b16 %v718
    %v1084 = vunpack.c.l.b16 %v719
    %v1085 = vunpack.c.h.b16 %v719
    %v1086 = vunpack.c.l.b16 %v720
    %v1087 = vunpack.c.h.b16 %v720
    %v1088 = vunpack.c.l.b16 %v721
    %v1089 = vunpack.c.h.b16 %v721
    %v1090 = vunpack.c.l.b16 %v722
    %v1091 = vunpack.c.h.b16 %v722
    %v1092 = vunpack.c.l.b16 %v723
    %v1093 = vunpack.c.h.b16 %v723
    %v1094 = vunpack.c.l.b16 %v724
    %v1095 = vunpack.c.h.b16 %v724
    %v1096 = vunpack.c.l.b16 %v725
    %v1097 = vunpack.c.h.b16 %v725
    %v1098 = vunpack.c.l.b16 %v726
    %v1099 = vunpack.c.h.b16 %v726
    %v1100 = vunpack.c.l.b16 %v727
    %v1101 = vunpack.c.h.b16 %v727
    %v1102 = vunpack.c.l.b16 %v728
    %v1103 = vunpack.c.h.b16 %v728
    %v1104 = vunpack.c.l.b16 %v729
    %v1105 = vunpack.c.h.b16 %v729
    %v1106 = vunpack.c.l.b16 %v730
    %v1107 = vunpack.c.h.b16 %v730
    %v1108 = vunpack.c.l.b16 %v731
    %v1109 = vunpack.c.h.b16 %v731
    %v1110 = vunpack.c.l.b16 %v732
    %v1111 = vunpack.c.h.b16 %v732
    %v1112 = vunpack.c.l.b16 %v733
    %v1113 = vunpack.c.h.b16 %v733
    %v1114 = vunpack.c.l.b16 %v734
    %v1115 = vunpack.c.h.b16 %v734
    %v1116 = vunpack.c.l.b16 %v735
    %v1117 = vunpack.c.h.b16 %v735
    %v1118 = vunpack.c.l.b16 %v736
    %v1119 = vunpack.c.h.b16 %v736
    %v1120 = vunpack.c.l.b16 %v737
    %v1121 = vunpack.c.h.b16 %v737
    %v1122 = vunpack.c.l.b16 %v738
    %v1123 = vunpack.c.h.b16 %v738
    %v1124 = vunpack.c.l.b16 %v739
    %v1125 = vunpack.c.h.b16 %v739
    %v1126 = vunpack.c.l.b16 %v740
    %v1127 = vunpack.c.h.b16 %v740
    %v1128 = vunpack.c.l.b16 %v741
    %v1129 = vunpack.c.h.b16 %v741
    %v1130 = vunpack.c.l.b16 %v742
    %v1131 = vunpack.c.h.b16 %v742
    %v1132 = vunpack.c.l.b16 %v743
    %v1133 = vunpack.c.h.b16 %v743
    %v1134 = vunpack.c.l.b16 %v744
    %v1135 = vunpack.c.h.b16 %v744
    %v1136 = vunpack.c.l.b16 %v745
    %v1137 = vunpack.c.h.b16 %v745
    %v1138 = vunpack.c.l.b16 %v746
    %v1139 = vunpack.c.h.b16 %v746
    %v1140 = vunpack.c.l.b16 %v747
    %v1141 = vunpack.c.h.b16 %v747
    %v1142 = vunpack.c.l.b16 %v748
    %v1143 = vunpack.c.h.b16 %v748
    %v1144 = vpack.c.b16 %v892, %v888
    %v1145 = vpack.c.b16 %v893, %v889
    %v1146 = vpack.c.b16 %v894, %v890
    %v1147 = vpack.c.b16 %v895, %v891
    %v1148 = vpack.c.b16 %v900, %v896
    %v1149 = vpack.c.b16 %v901, %v897
    %v1150 = vpack.c.b16 %v902, %v898
    %v1151 = vpack.c.b16 %v903, %v899
    %v1152 = vpack.c.b16 %v908, %v904
    %v1153 = vpack.c.b16 %v909, %v905
    %v1154 = vpack.c.b16 %v910, %v906
    %v1155 = vpack.c.b16 %v911, %v907
    %v1156 = vpack.c.b16 %v916, %v912
    %v1157 = vpack.c.b16 %v917, %v913
    %v1158 = vpack.c.b16 %v918, %v914
    %v1159 = vpack.c.b16 %v919, %v915
    %v1160 = vpack.c.b16 %v924, %v920
    %v1161 = vpack.c.b16 %v925, %v921
    %v1162 = vpack.c.b16 %v926, %v922
    %v1163 = vpack.c.b16 %v927, %v923
    %v1164 = vpack.c.b16 %v932, %v928
    %v1165 = vpack.c.b16 %v933, %v929
    %v1166 = vpack.c.b16 %v934, %v930
    %v1167 = vpack.c.b16 %v935, %v931
    %v1168 = vpack.c.b16 %v940, %v936
    %v1169 = vpack.c.b16 %v941, %v937
    %v1170 = vpack.c.b16 %v942, %v938
    %v1171 = vpack.c.b16 %v943, %v939
    %v1172 = vpack.c.b16 %v948, %v944
    %v1173 = vpack.c.b16 %v949, %v945
    %v1174 = vpack.c.b16 %v950, %v946
    %v1175 = vpack.c.b16 %v951, %v947
    %v1176 = vpack.c.b16 %v956, %v952
    %v1177 = vpack.c.b16 %v957, %v953
    %v1178 = vpack.c.b16 %v958, %v954
    %v1179 = vpack.c.b16 %v959, %v955
    %v1180 = vpack.c.b16 %v964, %v960
    %v1181 = vpack.c.b16 %v965, %v961
    %v1182 = vpack.c.b16 %v966, %v962
    %v1183 = vpack.c.b16 %v967, %v963
    %v1184 = vpack.c.b16 %v972, %v968
    %v1185 = vpack.c.b16 %v973, %v969
    %v1186 = vpack.c.b16 %v974, %v970
    %v1187 = vpack.c.b16 %v975, %v971
    %v1188 = vpack.c.b16 %v980, %v976
    %v1189 = vpack.c.b16 %v981, %v977
    %v1190 = vpack.c.b16 %v982, %v978
    %v1191 = vpack.c.b16 %v983, %v979
    %v1192 = vpack.c.b16 %v988, %v984
    %v1193 = vpack.c.b16 %v989, %v985
    %v1194 = vpack.c.b16 %v990, %v986
    %v1195 = vpack.c.b16 %v991, %v987
    %v1196 = vpack.c.b16 %v996, %v992
    %v1197 = vpack.c.b16 %v997, %v993
    %v1198 = vpack.c.b16 %v998, %v994
    %v1199 = vpack.c.b16 %v999, %v995
    %v1200 = vpack.c.b16 %v1004, %v1000
    %v1201 = vpack.c.b16 %v1005, %v1001
    %v1202 = vpack.c.b16 %v1006, %v1002
    %v1203 = vpack.c.b16 %v1007, %v1003
    %v1204 = vpack.c.b16 %v1012, %v1008
    %v1205 = vpack.c.b16 %v1013, %v1009
    %v1206 = vpack.c.b16 %v1014, %v1010
    %v1207 = vpack.c.b16 %v1015, %v1011
    %v1208 = vpack.c.b16 %v1020, %v1016
    %v1209 = vpack.c.b16 %v1021, %v1017
    %v1210 = vpack.c.b16 %v1022, %v1018
    %v1211 = vpack.c.b16 %v1023, %v1019
    %v1212 = vpack.c.b16 %v1028, %v1024
    %v1213 = vpack.c.b16 %v1029, %v1025
    %v1214 = vpack.c.b16 %v1030, %v1026
    %v1215 = vpack.c.b16 %v1031, %v1027
    %v1216 = vpack.c.b16 %v1036, %v1032
    %v1217 = vpack.c.b16 %v1037, %v1033
    %v1218 = vpack.c.b16 %v1038, %v1034
    %v1219 = vpack.c.b16 %v1039, %v1035
    %v1220 = vpack.c.b16 %v1044, %v1040
    %v1221 = vpack.c.b16 %v1045, %v1041
    %v1222 = vpack.c.b16 %v1046, %v1042
    %v1223 = vpack.c.b16 %v1047, %v1043
    %v1224 = vpack.c.b16 %v1052, %v1048
    %v1225 = vpack.c.b16 %v1053, %v1049
    %v1226 = vpack.c.b16 %v1054, %v1050
    %v1227 = vpack.c.b16 %v1055, %v1051
    %v1228 = vpack.c.b16 %v1060, %v1056
    %v1229 = vpack.c.b16 %v1061, %v1057
    %v1230 = vpack.c.b16 %v1062, %v1058
    %v1231 = vpack.c.b16 %v1063, %v1059
    %v1232 = vpack.c.b16 %v1068, %v1064
    %v1233 = vpack.c.b16 %v1069, %v1065
    %v1234 = vpack.c.b16 %v1070, %v1066
    %v1235 = vpack.c.b16 %v1071, %v1067
    %v1236 = vpack.c.b16 %v1076, %v1072
    %v1237 = vpack.c.b16 %v1077, %v1073
    %v1238 = vpack.c.b16 %v1078, %v1074
    %v1239 = vpack.c.b16 %v1079, %v1075
    %v1240 = vpack.c.b16 %v1084, %v1080
    %v1241 = vpack.c.b16 %v1085, %v1081
    %v1242 = vpack.c.b16 %v1086, %v1082
    %v1243 = vpack.c.b16 %v1087, %v1083
    %v1244 = vpack.c.b16 %v1092, %v1088
    %v1245 = vpack.c.b16 %v1093, %v1089
    %v1246 = vpack.c.b16 %v1094, %v1090
    %v1247 = vpack.c.b16 %v1095, %v1091
    %v1248 = vpack.c.b16 %v1100, %v1096
    %v1249 = vpack.c.b16 %v1101, %v1097
    %v1250 = vpack.c.b16 %v1102, %v1098
    %v1251 = vpack.c.b16 %v1103, %v1099
    %v1252 = vpack.c.b16 %v1108, %v1104
    %v1253 = vpack.c.b16 %v1109, %v1105
    %v1254 = vpack.c.b16 %v1110, %v1106
    %v1255 = vpack.c.b16 %v1111, %v1107
    %v1256 = vpack.c.b16 %v1116, %v1112
    %v1257 = vpack.c.b16 %v1117, %v1113
    %v1258 = vpack.c.b16 %v1118, %v1114
    %v1259 = vpack.c.b16 %v1119, %v1115
    %v1260 = vpack.c.b16 %v1124, %v1120
    %v1261 = vpack.c.b16 %v1125, %v1121
    %v1262 = vpack.c.b16 %v1126, %v1122
    %v1263 = vpack.c.b16 %v1127, %v1123
    %v1264 = vpack.c.b16 %v1132, %v1128
    %v1265 = vpack.c.b16 %v1133, %v1129
    %v1266 = vpack.c.b16 %v1134, %v1130
    %v1267 = vpack.c.b16 %v1135, %v1131
    %v1268 = vpack.c.b16 %v1140, %v1136
    %v1269 = vpack.c.b16 %v1141, %v1137
    %v1270 = vpack.c.b16 %v1142, %v1138
    %v1271 = vpack.c.b16 %v1143, %v1139
    %1400 = vmatpush.bf16.msra.mxu0 %v1172
    %1401 = vmatpush.bf16.msra.mxu0 %v1168
    %1402 = vmatpush.bf16.msra.mxu0 %v1164
    %1403 = vmatpush.bf16.msra.mxu0 %v1160
    %1404 = vmatpush.bf16.msra.mxu0 %v1156
    %1405 = vmatpush.bf16.msra.mxu0 %v1152
    %1406 = vmatpush.bf16.msra.mxu0 %v1148
    %1407 = vmatpush.bf16.msra.mxu0 %v1144
    %1408 = vmatmul.bf16.gmra.mxu0 %v617
    %v1409 = vpop.f32.mrf.mxu0
    %v1410 = vadd.f32 %v752, %v1409
    %v1411 = vpop.f32.mrf.mxu0
    %1412 = vdwg.mxu0
    %1413 = vmatpush.bf16.msra.mxu0 %v1204
    %1414 = vmatpush.bf16.msra.mxu0 %v1200
    %1415 = vmatpush.bf16.msra.mxu0 %v1196
    %1416 = vmatpush.bf16.msra.mxu0 %v1192
    %1417 = vmatpush.bf16.msra.mxu0 %v1188
    %1418 = vmatpush.bf16.msra.mxu0 %v1184
    %1419 = vmatpush.bf16.msra.mxu0 %v1180
    %1420 = vmatpush.bf16.msra.mxu0 %v1176
    %1421 = vmatmul.bf16.gmra.mxu0 %v618
    %v1422 = vpop.f32.mrf.mxu0
    %v1423 = vadd.f32 %v1410, %v1422
    %v1424 = vpop.f32.mrf.mxu0
    %1425 = vdwg.mxu0
    %1426 = vmatpush.bf16.msra.mxu0 %v1236
    %1427 = vmatpush.bf16.msra.mxu0 %v1232
    %1428 = vmatpush.bf16.msra.mxu0 %v1228
    %1429 = vmatpush.bf16.msra.mxu0 %v1224
    %1430 = vmatpush.bf16.msra.mxu0 %v1220
    %1431 = vmatpush.bf16.msra.mxu0 %v1216
    %1432 = vmatpush.bf16.msra.mxu0 %v1212
    %1433 = vmatpush.bf16.msra.mxu0 %v1208
    %1434 = vmatmul.bf16.gmra.mxu0 %v619
    %v1435 = vpop.f32.mrf.mxu0
    %v1436 = vadd.f32 %v1423, %v1435
    %v1437 = vpop.f32.mrf.mxu0
    %1438 = vdwg.mxu0
    %1439 = vmatpush.bf16.msra.mxu0 %v1268
    %1440 = vmatpush.bf16.msra.mxu0 %v1264
    %1441 = vmatpush.bf16.msra.mxu0 %v1260
    %1442 = vmatpush.bf16.msra.mxu0 %v1256
    %1443 = vmatpush.bf16.msra.mxu0 %v1252
    %1444 = vmatpush.bf16.msra.mxu0 %v1248
    %1445 = vmatpush.bf16.msra.mxu0 %v1244
    %1446 = vmatpush.bf16.msra.mxu0 %v1240
    %1447 = vmatmul.bf16.gmra.mxu0 %v620
    %v1448 = vpop.f32.mrf.mxu0
    %v1449 = vadd.f32 %v1436, %v1448
    %v1450 = vpop.f32.mrf.mxu0
    %1451 = vdwg.mxu0
    %1452 = vmatpush.bf16.msra.mxu0 %v1173
    %1453 = vmatpush.bf16.msra.mxu0 %v1169
    %1454 = vmatpush.bf16.msra.mxu0 %v1165
    %1455 = vmatpush.bf16.msra.mxu0 %v1161
    %1456 = vmatpush.bf16.msra.mxu0 %v1157
    %1457 = vmatpush.bf16.msra.mxu0 %v1153
    %1458 = vmatpush.bf16.msra.mxu0 %v1149
    %1459 = vmatpush.bf16.msra.mxu0 %v1145
    %1460 = vmatmul.bf16.gmra.mxu0 %v617
    %v1461 = vpop.f32.mrf.mxu0
    %v1462 = vadd.f32 %v753, %v1461
    %v1463 = vpop.f32.mrf.mxu0
    %1464 = vdwg.mxu0
    %1465 = vmatpush.bf16.msra.mxu0 %v1205
    %1466 = vmatpush.bf16.msra.mxu0 %v1201
    %1467 = vmatpush.bf16.msra.mxu0 %v1197
    %1468 = vmatpush.bf16.msra.mxu0 %v1193
    %1469 = vmatpush.bf16.msra.mxu0 %v1189
    %1470 = vmatpush.bf16.msra.mxu0 %v1185
    %1471 = vmatpush.bf16.msra.mxu0 %v1181
    %1472 = vmatpush.bf16.msra.mxu0 %v1177
    %1473 = vmatmul.bf16.gmra.mxu0 %v618
    %v1474 = vpop.f32.mrf.mxu0
    %v1475 = vadd.f32 %v1462, %v1474
    %v1476 = vpop.f32.mrf.mxu0
    %1477 = vdwg.mxu0
    %1478 = vmatpush.bf16.msra.mxu0 %v1237
    %1479 = vmatpush.bf16.msra.mxu0 %v1233
    %1480 = vmatpush.bf16.msra.mxu0 %v1229
    %1481 = vmatpush.bf16.msra.mxu0 %v1225
    %1482 = vmatpush.bf16.msra.mxu0 %v1221
    %1483 = vmatpush.bf16.msra.mxu0 %v1217
    %1484 = vmatpush.bf16.msra.mxu0 %v1213
    %1485 = vmatpush.bf16.msra.mxu0 %v1209
    %1486 = vmatmul.bf16.gmra.mxu0 %v619
    %v1487 = vpop.f32.mrf.mxu0
    %v1488 = vadd.f32 %v1475, %v1487
    %v1489 = vpop.f32.mrf.mxu0
    %1490 = vdwg.mxu0
    %1491 = vmatpush.bf16.msra.mxu0 %v1269
    %1492 = vmatpush.bf16.msra.mxu0 %v1265
    %1493 = vmatpush.bf16.msra.mxu0 %v1261
    %1494 = vmatpush.bf16.msra.mxu0 %v1257
    %1495 = vmatpush.bf16.msra.mxu0 %v1253
    %1496 = vmatpush.bf16.msra.mxu0 %v1249
    %1497 = vmatpush.bf16.msra.mxu0 %v1245
    %1498 = vmatpush.bf16.msra.mxu0 %v1241
    %1499 = vmatmul.bf16.gmra.mxu0 %v620
    %v1500 = vpop.f32.mrf.mxu0
    %v1501 = vadd.f32 %v1488, %v1500
    %v1502 = vpop.f32.mrf.mxu0
    %1503 = vdwg.mxu0
    %1504 = vmatpush.bf16.msra.mxu0 %v1174
    %1505 = vmatpush.bf16.msra.mxu0 %v1170
    %1506 = vmatpush.bf16.msra.mxu0 %v1166
    %1507 = vmatpush.bf16.msra.mxu0 %v1162
    %1508 = vmatpush.bf16.msra.mxu0 %v1158
    %1509 = vmatpush.bf16.msra.mxu0 %v1154
    %1510 = vmatpush.bf16.msra.mxu0 %v1150
    %1511 = vmatpush.bf16.msra.mxu0 %v1146
    %1512 = vmatmul.bf16.gmra.mxu0 %v617
    %v1513 = vpop.f32.mrf.mxu0
    %v1514 = vadd.f32 %v754, %v1513
    %v1515 = vpop.f32.mrf.mxu0
    %1516 = vdwg.mxu0
    %1517 = vmatpush.bf16.msra.mxu0 %v1206
    %1518 = vmatpush.bf16.msra.mxu0 %v1202
    %1519 = vmatpush.bf16.msra.mxu0 %v1198
    %1520 = vmatpush.bf16.msra.mxu0 %v1194
    %1521 = vmatpush.bf16.msra.mxu0 %v1190
    %1522 = vmatpush.bf16.msra.mxu0 %v1186
    %1523 = vmatpush.bf16.msra.mxu0 %v1182
    %1524 = vmatpush.bf16.msra.mxu0 %v1178
    %1525 = vmatmul.bf16.gmra.mxu0 %v618
    %v1526 = vpop.f32.mrf.mxu0
    %v1527 = vadd.f32 %v1514, %v1526
    %v1528 = vpop.f32.mrf.mxu0
    %1529 = vdwg.mxu0
    %1530 = vmatpush.bf16.msra.mxu0 %v1238
    %1531 = vmatpush.bf16.msra.mxu0 %v1234
    %1532 = vmatpush.bf16.msra.mxu0 %v1230
    %1533 = vmatpush.bf16.msra.mxu0 %v1226
    %1534 = vmatpush.bf16.msra.mxu0 %v1222
    %1535 = vmatpush.bf16.msra.mxu0 %v1218
    %1536 = vmatpush.bf16.msra.mxu0 %v1214
    %1537 = vmatpush.bf16.msra.mxu0 %v1210
    %1538 = vmatmul.bf16.gmra.mxu0 %v619
    %v1539 = vpop.f32.mrf.mxu0
    %v1540 = vadd.f32 %v1527, %v1539
    %v1541 = vpop.f32.mrf.mxu0
    %1542 = vdwg.mxu0
    %1543 = vmatpush.bf16.msra.mxu0 %v1270
    %1544 = vmatpush.bf16.msra.mxu0 %v1266
    %1545 = vmatpush.bf16.msra.mxu0 %v1262
    %1546 = vmatpush.bf16.msra.mxu0 %v1258
    %1547 = vmatpush.bf16.msra.mxu0 %v1254
    %1548 = vmatpush.bf16.msra.mxu0 %v1250
    %1549 = vmatpush.bf16.msra.mxu0 %v1246
    %1550 = vmatpush.bf16.msra.mxu0 %v1242
    %1551 = vmatmul.bf16.gmra.mxu0 %v620
    %v1552 = vpop.f32.mrf.mxu0
    %v1553 = vadd.f32 %v1540, %v1552
    %v1554 = vpop.f32.mrf.mxu0
    %1555 = vdwg.mxu0
    %1556 = vmatpush.bf16.msra.mxu0 %v1175
    %1557 = vmatpush.bf16.msra.mxu0 %v1171
    %1558 = vmatpush.bf16.msra.mxu0 %v1167
    %1559 = vmatpush.bf16.msra.mxu0 %v1163
    %1560 = vmatpush.bf16.msra.mxu0 %v1159
    %1561 = vmatpush.bf16.msra.mxu0 %v1155
    %1562 = vmatpush.bf16.msra.mxu0 %v1151
    %1563 = vmatpush.bf16.msra.mxu0 %v1147
    %1564 = vmatmul.bf16.gmra.mxu0 %v617
    %v1565 = vpop.f32.mrf.mxu0
    %v1566 = vadd.f32 %v755, %v1565
    %v1567 = vpop.f32.mrf.mxu0
    %1568 = vdwg.mxu0
    %1569 = vmatpush.bf16.msra.mxu0 %v1207
    %1570 = vmatpush.bf16.msra.mxu0 %v1203
    %1571 = vmatpush.bf16.msra.mxu0 %v1199
    %1572 = vmatpush.bf16.msra.mxu0 %v1195
    %1573 = vmatpush.bf16.msra.mxu0 %v1191
    %1574 = vmatpush.bf16.msra.mxu0 %v1187
    %1575 = vmatpush.bf16.msra.mxu0 %v1183
    %1576 = vmatpush.bf16.msra.mxu0 %v1179
    %1577 = vmatmul.bf16.gmra.mxu0 %v618
    %v1578 = vpop.f32.mrf.mxu0
    %v1579 = vadd.f32 %v1566, %v1578
    %v1580 = vpop.f32.mrf.mxu0
    %1581 = vdwg.mxu0
    %1582 = vmatpush.bf16.msra.mxu0 %v1239
    %1583 = vmatpush.bf16.msra.mxu0 %v1235
    %1584 = vmatpush.bf16.msra.mxu0 %v1231
    %1585 = vmatpush.bf16.msra.mxu0 %v1227
    %1586 = vmatpush.bf16.msra.mxu0 %v1223
    %1587 = vmatpush.bf16.msra.mxu0 %v1219
    %1588 = vmatpush.bf16.msra.mxu0 %v1215
    %1589 = vmatpush.bf16.msra.mxu0 %v1211
    %1590 = vmatmul.bf16.gmra.mxu0 %v619
    %v1591 = vpop.f32.mrf.mxu0
    %v1592 = vadd.f32 %v1579, %v1591
    %v1593 = vpop.f32.mrf.mxu0
    %1594 = vdwg.mxu0
    %1595 = vmatpush.bf16.msra.mxu0 %v1271
    %1596 = vmatpush.bf16.msra.mxu0 %v1267
    %1597 = vmatpush.bf16.msra.mxu0 %v1263
    %1598 = vmatpush.bf16.msra.mxu0 %v1259
    %1599 = vmatpush.bf16.msra.mxu0 %v1255
    %1600 = vmatpush.bf16.msra.mxu0 %v1251
    %1601 = vmatpush.bf16.msra.mxu0 %v1247
    %1602 = vmatpush.bf16.msra.mxu0 %v1243
    %1603 = vmatmul.bf16.gmra.mxu0 %v620
    %v1604 = vpop.f32.mrf.mxu0
    %v1605 = vadd.f32 %v1592, %v1604
    %v1606 = vpop.f32.mrf.mxu0
    %1607 = vdwg.mxu0
    %v1608 = vmul.f32 %v1449, 0.5
    %v1609 = vmul.f32 %v1501, 0.5
    %v1610 = vmul.f32 %v1553, 0.5
    %v1611 = vmul.f32 %v1605, 0.5
    %v1612 = vmul.f32 %v1449, 0.70710677
    %v1613 = vmul.f32 %v1501, 0.70710677
    %v1614 = vmul.f32 %v1553, 0.70710677
    %v1615 = vmul.f32 %v1605, 0.70710677
    %v1616 = vmul.f32 %v1612, %v1612
    %v1617 = vmin.f32 16.0, %v1616
    %v1618 = vmul.f32 %v1617, 2.1237322e-06
    %v1619 = vadd.f32 %v1618, 0.00028619796
    %v1620 = vmul.f32 %v1617, %v1619
    %v1621 = vadd.f32 %v1620, 0.0036580483
    %v1622 = vmul.f32 %v1617, %v1621
    %v1623 = vadd.f32 %v1622, 0.05243302
    %v1624 = vmul.f32 %v1617, %v1623
    %v1625 = vadd.f32 %v1624, 0.18741608
    %v1626 = vmul.f32 %v1617, %v1625
    %v1627 = vadd.f32 %v1626, 1.1283791
    %v1628 = vmul.f32 %v1612, %v1627
    %v1629 = vmul.f32 %v1617, 3.8918573e-05
    %v1630 = vadd.f32 %v1629, 0.001143296
    %v1631 = vmul.f32 %v1617, %v1630
    %v1632 = vadd.f32 %v1631, 0.014752088
    %v1633 = vmul.f32 %v1617, %v1632
    %v1634 = vadd.f32 %v1633, 0.112945676
    %v1635 = vmul.f32 %v1617, %v1634
    %v1636 = vadd.f32 %v1635, 0.4994258
    %v1637 = vmul.f32 %v1617, %v1636
    %v1638 = vadd.f32 %v1637, 1.0
    %v1639 = vrcp.pop %v1638
    %v1640 = vmul.f32 %v1638, %v1639
    %v1641 = vsub.f32 1.0, %v1640
    %v1642 = vmul.f32 %v1639, %v1641
    %v1643 = vadd.f32 %v1639, %v1642
    %vm1644 = vweird.f32 %v1638
    %vm1645 = vweird.f32 %v1639
    %vm1646 = vmor %vm1644, %vm1645
    %v1647 = vsel %vm1646, %v1639, %v1643
    %v1648 = vand.u32 2147483647, %v1638
    %vm1649 = vcmp.eq.f32.partialorder %v1648, 8.507059e+37
    %v1650 = vand.u32 %v1638, 2147483648
    %v1651 = vor.u32 1.1754944e-38, %v1650
    %v1652 = vsel %vm1649, %v1651, %v1647
    %v1653 = vmul.f32 %v1628, %v1652
    %v1654 = vmin.f32 %v1653, 1.0
    %v1655 = vmax.f32 %v1654, -1.0
    %v1656 = vmul.f32 %v1613, %v1613
    %v1657 = vmin.f32 16.0, %v1656
    %v1658 = vmul.f32 %v1657, 2.1237322e-06
    %v1659 = vadd.f32 %v1658, 0.00028619796
    %v1660 = vmul.f32 %v1657, %v1659
    %v1661 = vadd.f32 %v1660, 0.0036580483
    %v1662 = vmul.f32 %v1657, %v1661
    %v1663 = vadd.f32 %v1662, 0.05243302
    %v1664 = vmul.f32 %v1657, %v1663
    %v1665 = vadd.f32 %v1664, 0.18741608
    %v1666 = vmul.f32 %v1657, %v1665
    %v1667 = vadd.f32 %v1666, 1.1283791
    %v1668 = vmul.f32 %v1613, %v1667
    %v1669 = vmul.f32 %v1657, 3.8918573e-05
    %v1670 = vadd.f32 %v1669, 0.001143296
    %v1671 = vmul.f32 %v1657, %v1670
    %v1672 = vadd.f32 %v1671, 0.014752088
    %v1673 = vmul.f32 %v1657, %v1672
    %v1674 = vadd.f32 %v1673, 0.112945676
    %v1675 = vmul.f32 %v1657, %v1674
    %v1676 = vadd.f32 %v1675, 0.4994258
    %v1677 = vmul.f32 %v1657, %v1676
    %v1678 = vadd.f32 %v1677, 1.0
    %v1679 = vrcp.pop %v1678
    %v1680 = vmul.f32 %v1678, %v1679
    %v1681 = vsub.f32 1.0, %v1680
    %v1682 = vmul.f32 %v1679, %v1681
    %v1683 = vadd.f32 %v1679, %v1682
    %vm1684 = vweird.f32 %v1678
    %vm1685 = vweird.f32 %v1679
    %vm1686 = vmor %vm1684, %vm1685
    %v1687 = vsel %vm1686, %v1679, %v1683
    %v1688 = vand.u32 2147483647, %v1678
    %vm1689 = vcmp.eq.f32.partialorder %v1688, 8.507059e+37
    %v1690 = vand.u32 %v1678, 2147483648
    %v1691 = vor.u32 1.1754944e-38, %v1690
    %v1692 = vsel %vm1689, %v1691, %v1687
    %v1693 = vmul.f32 %v1668, %v1692
    %v1694 = vmin.f32 %v1693, 1.0
    %v1695 = vmax.f32 %v1694, -1.0
    %v1696 = vmul.f32 %v1614, %v1614
    %v1697 = vmin.f32 16.0, %v1696
    %v1698 = vmul.f32 %v1697, 2.1237322e-06
    %v1699 = vadd.f32 %v1698, 0.00028619796
    %v1700 = vmul.f32 %v1697, %v1699
    %v1701 = vadd.f32 %v1700, 0.0036580483
    %v1702 = vmul.f32 %v1697, %v1701
    %v1703 = vadd.f32 %v1702, 0.05243302
    %v1704 = vmul.f32 %v1697, %v1703
    %v1705 = vadd.f32 %v1704, 0.18741608
    %v1706 = vmul.f32 %v1697, %v1705
    %v1707 = vadd.f32 %v1706, 1.1283791
    %v1708 = vmul.f32 %v1614, %v1707
    %v1709 = vmul.f32 %v1697, 3.8918573e-05
    %v1710 = vadd.f32 %v1709, 0.001143296
    %v1711 = vmul.f32 %v1697, %v1710
    %v1712 = vadd.f32 %v1711, 0.014752088
    %v1713 = vmul.f32 %v1697, %v1712
    %v1714 = vadd.f32 %v1713, 0.112945676
    %v1715 = vmul.f32 %v1697, %v1714
    %v1716 = vadd.f32 %v1715, 0.4994258
    %v1717 = vmul.f32 %v1697, %v1716
    %v1718 = vadd.f32 %v1717, 1.0
    %v1719 = vrcp.pop %v1718
    %v1720 = vmul.f32 %v1718, %v1719
    %v1721 = vsub.f32 1.0, %v1720
    %v1722 = vmul.f32 %v1719, %v1721
    %v1723 = vadd.f32 %v1719, %v1722
    %vm1724 = vweird.f32 %v1718
    %vm1725 = vweird.f32 %v1719
    %vm1726 = vmor %vm1724, %vm1725
    %v1727 = vsel %vm1726, %v1719, %v1723
    %v1728 = vand.u32 2147483647, %v1718
    %vm1729 = vcmp.eq.f32.partialorder %v1728, 8.507059e+37
    %v1730 = vand.u32 %v1718, 2147483648
    %v1731 = vor.u32 1.1754944e-38, %v1730
    %v1732 = vsel %vm1729, %v1731, %v1727
    %v1733 = vmul.f32 %v1708, %v1732
    %v1734 = vmin.f32 %v1733, 1.0
    %v1735 = vmax.f32 %v1734, -1.0
    %v1736 = vmul.f32 %v1615, %v1615
    %v1737 = vmin.f32 16.0, %v1736
    %v1738 = vmul.f32 %v1737, 2.1237322e-06
    %v1739 = vadd.f32 %v1738, 0.00028619796
    %v1740 = vmul.f32 %v1737, %v1739
    %v1741 = vadd.f32 %v1740, 0.0036580483
    %v1742 = vmul.f32 %v1737, %v1741
    %v1743 = vadd.f32 %v1742, 0.05243302
    %v1744 = vmul.f32 %v1737, %v1743
    %v1745 = vadd.f32 %v1744, 0.18741608
    %v1746 = vmul.f32 %v1737, %v1745
    %v1747 = vadd.f32 %v1746, 1.1283791
    %v1748 = vmul.f32 %v1615, %v1747
    %v1749 = vmul.f32 %v1737, 3.8918573e-05
    %v1750 = vadd.f32 %v1749, 0.001143296
    %v1751 = vmul.f32 %v1737, %v1750
    %v1752 = vadd.f32 %v1751, 0.014752088
    %v1753 = vmul.f32 %v1737, %v1752
    %v1754 = vadd.f32 %v1753, 0.112945676
    %v1755 = vmul.f32 %v1737, %v1754
    %v1756 = vadd.f32 %v1755, 0.4994258
    %v1757 = vmul.f32 %v1737, %v1756
    %v1758 = vadd.f32 %v1757, 1.0
    %v1759 = vrcp.pop %v1758
    %v1760 = vmul.f32 %v1758, %v1759
    %v1761 = vsub.f32 1.0, %v1760
    %v1762 = vmul.f32 %v1759, %v1761
    %v1763 = vadd.f32 %v1759, %v1762
    %vm1764 = vweird.f32 %v1758
    %vm1765 = vweird.f32 %v1759
    %vm1766 = vmor %vm1764, %vm1765
    %v1767 = vsel %vm1766, %v1759, %v1763
    %v1768 = vand.u32 2147483647, %v1758
    %vm1769 = vcmp.eq.f32.partialorder %v1768, 8.507059e+37
    %v1770 = vand.u32 %v1758, 2147483648
    %v1771 = vor.u32 1.1754944e-38, %v1770
    %v1772 = vsel %vm1769, %v1771, %v1767
    %v1773 = vmul.f32 %v1748, %v1772
    %v1774 = vmin.f32 %v1773, 1.0
    %v1775 = vmax.f32 %v1774, -1.0
    %v1776 = vadd.f32 %v1655, 1.0
    %v1777 = vadd.f32 %v1695, 1.0
    %v1778 = vadd.f32 %v1735, 1.0
    %v1779 = vadd.f32 %v1775, 1.0
    %v1780 = vmul.f32 %v1608, %v1776
    %v1781 = vmul.f32 %v1609, %v1777
    %v1782 = vmul.f32 %v1610, %v1778
    %v1783 = vmul.f32 %v1611, %v1779
    %s1784 = scalar_lea.vmem [#allocation6], 2
    %v1785 = vld [vmem:[%s1784] ss:$8 sm:$0xf]
    %s1786 = scalar_lea.vmem [#allocation6], 3
    %v1787 = vld [vmem:[%s1786] ss:$8 sm:$0xf]
    %v1788 = vrot.slane %v1780, 4
    %v1789 = vadd.f32 %v1780, %v1788
    %v1790 = vrot.slane %v1789, 2
    %v1791 = vadd.f32 %v1789, %v1790
    %v1792 = vrot.slane %v1791, 1
    %v1793 = vadd.f32 %v1791, %v1792
    %v1794 = vrot.slane %v1781, 4
    %v1795 = vadd.f32 %v1781, %v1794
    %v1796 = vrot.slane %v1795, 2
    %v1797 = vadd.f32 %v1795, %v1796
    %v1798 = vrot.slane %v1797, 1
    %v1799 = vadd.f32 %v1797, %v1798
    %v1800 = vrot.slane %v1782, 4
    %v1801 = vadd.f32 %v1782, %v1800
    %v1802 = vrot.slane %v1801, 2
    %v1803 = vadd.f32 %v1801, %v1802
    %v1804 = vrot.slane %v1803, 1
    %v1805 = vadd.f32 %v1803, %v1804
    %v1806 = vrot.slane %v1783, 4
    %v1807 = vadd.f32 %v1783, %v1806
    %v1808 = vrot.slane %v1807, 2
    %v1809 = vadd.f32 %v1807, %v1808
    %v1810 = vrot.slane %v1809, 1
    %v1811 = vadd.f32 %v1809, %v1810
    %v1812 = vmul.f32 %v1793, %v471
    %v1813 = vmul.f32 %v1799, %v471
    %v1814 = vmul.f32 %v1805, %v471
    %v1815 = vmul.f32 %v1811, %v471
    %v1816 = vmul.f32 %v1780, %v1780
    %v1817 = vmul.f32 %v1781, %v1781
    %v1818 = vmul.f32 %v1782, %v1782
    %v1819 = vmul.f32 %v1783, %v1783
    %v1820 = vrot.slane %v1816, 4
    %v1821 = vadd.f32 %v1816, %v1820
    %v1822 = vrot.slane %v1821, 2
    %v1823 = vadd.f32 %v1821, %v1822
    %v1824 = vrot.slane %v1823, 1
    %v1825 = vadd.f32 %v1823, %v1824
    %v1826 = vrot.slane %v1817, 4
    %v1827 = vadd.f32 %v1817, %v1826
    %v1828 = vrot.slane %v1827, 2
    %v1829 = vadd.f32 %v1827, %v1828
    %v1830 = vrot.slane %v1829, 1
    %v1831 = vadd.f32 %v1829, %v1830
    %v1832 = vrot.slane %v1818, 4
    %v1833 = vadd.f32 %v1818, %v1832
    %v1834 = vrot.slane %v1833, 2
    %v1835 = vadd.f32 %v1833, %v1834
    %v1836 = vrot.slane %v1835, 1
    %v1837 = vadd.f32 %v1835, %v1836
    %v1838 = vrot.slane %v1819, 4
    %v1839 = vadd.f32 %v1819, %v1838
    %v1840 = vrot.slane %v1839, 2
    %v1841 = vadd.f32 %v1839, %v1840
    %v1842 = vrot.slane %v1841, 1
    %v1843 = vadd.f32 %v1841, %v1842
    %v1844 = vmul.f32 %v1825, %v471
    %v1845 = vmul.f32 %v1831, %v471
    %v1846 = vmul.f32 %v1837, %v471
    %v1847 = vmul.f32 %v1843, %v471
    %v1848 = vmul.f32 %v1812, %v1812
    %v1849 = vmul.f32 %v1813, %v1813
    %v1850 = vmul.f32 %v1814, %v1814
    %v1851 = vmul.f32 %v1815, %v1815
    %v1852 = vsub.f32 %v1844, %v1848
    %v1853 = vsub.f32 %v1845, %v1849
    %v1854 = vsub.f32 %v1846, %v1850
    %v1855 = vsub.f32 %v1847, %v1851
    %v1856 = vmax.f32 %v1852, 0.0
    %v1857 = vmax.f32 %v1853, 0.0
    %v1858 = vmax.f32 %v1854, 0.0
    %v1859 = vmax.f32 %v1855, 0.0
    %v1860 = vadd.f32 %v1856, 1e-05
    %v1861 = vadd.f32 %v1857, 1e-05
    %v1862 = vadd.f32 %v1858, 1e-05
    %v1863 = vadd.f32 %v1859, 1e-05
    %v1864 = vrsqrt.pop %v1860
    %v1865 = vmul.f32 %v1864, %v1860
    %v1866 = vmul.f32 %v1865, %v1864
    %v1867 = vmul.f32 0.5, %v1866
    %v1868 = vsub.f32 1.5, %v1867
    %v1869 = vmul.f32 %v1864, %v1868
    %vm1870 = vweird.f32 %v1860
    %vm1871 = vweird.f32 %v1864
    %vm1872 = vmor %vm1870, %vm1871
    %v1873 = vsel %vm1872, %v1864, %v1869
    %v1874 = vrsqrt.pop %v1861
    %v1875 = vmul.f32 %v1874, %v1861
    %v1876 = vmul.f32 %v1875, %v1874
    %v1877 = vmul.f32 0.5, %v1876
    %v1878 = vsub.f32 1.5, %v1877
    %v1879 = vmul.f32 %v1874, %v1878
    %vm1880 = vweird.f32 %v1861
    %vm1881 = vweird.f32 %v1874
    %vm1882 = vmor %vm1880, %vm1881
    %v1883 = vsel %vm1882, %v1874, %v1879
    %v1884 = vrsqrt.pop %v1862
    %v1885 = vmul.f32 %v1884, %v1862
    %v1886 = vmul.f32 %v1885, %v1884
    %v1887 = vmul.f32 0.5, %v1886
    %v1888 = vsub.f32 1.5, %v1887
    %v1889 = vmul.f32 %v1884, %v1888
    %vm1890 = vweird.f32 %v1862
    %vm1891 = vweird.f32 %v1884
    %vm1892 = vmor %vm1890, %vm1891
    %v1893 = vsel %vm1892, %v1884, %v1889
    %v1894 = vrsqrt.pop %v1863
    %v1895 = vmul.f32 %v1894, %v1863
    %v1896 = vmul.f32 %v1895, %v1894
    %v1897 = vmul.f32 0.5, %v1896
    %v1898 = vsub.f32 1.5, %v1897
    %v1899 = vmul.f32 %v1894, %v1898
    %vm1900 = vweird.f32 %v1863
    %vm1901 = vweird.f32 %v1894
    %vm1902 = vmor %vm1900, %vm1901
    %v1903 = vsel %vm1902, %v1894, %v1899
    %v1905 = vperm.slane %v1785, 0
    %v1906 = vperm.slane %v1785, 1
    %v1907 = vperm.slane %v1785, 2
    %v1908 = vperm.slane %v1785, 3
    %v1913 = vmul.f32 %v1873, %v1905
    %v1914 = vmul.f32 %v1883, %v1906
    %v1915 = vmul.f32 %v1893, %v1907
    %v1916 = vmul.f32 %v1903, %v1908
    %v1917 = vmul.f32 %v1812, %v1913
    %v1918 = vmul.f32 %v1813, %v1914
    %v1919 = vmul.f32 %v1814, %v1915
    %v1920 = vmul.f32 %v1815, %v1916
    %v1925 = vrot.slane %v1918, 7
    %v1926 = vrot.slane %v1919, 6
    %v1927 = vrot.slane %v1920, 5
    %v1928 = vsel %vm588, %v1917, %v1925
    %v1929 = vsel %vm590, %v1926, %v1927
    %v1930 = vsel %vm592, %v1928, %v1929
    %v1932 = vsub.f32 %v1787, %v1930
    %s1933 = scalar_lea.vmem [#allocation6], 5
    %v1934 = vld [vmem:[%s1933] ss:$8 sm:$0xf]
    %v1935 = vld [vmem:[#allocation6 + $0x6] ss:$0 sm:$0xff]
    %v1937 = vperm.slane %v1934, 0
    %v1938 = vperm.slane %v1934, 1
    %v1939 = vperm.slane %v1934, 2
    %v1940 = vperm.slane %v1934, 3
    %v1945 = vmul.f32 %v1913, %v1937
    %v1946 = vmul.f32 %v1914, %v1938
    %v1947 = vmul.f32 %v1915, %v1939
    %v1948 = vmul.f32 %v1916, %v1940
    %v1949 = vmul.f32 %v1932, %v1934
    %v1951 = vperm.slane %v1949, 0
    %v1952 = vperm.slane %v1949, 1
    %v1953 = vperm.slane %v1949, 2
    %v1954 = vperm.slane %v1949, 3
    %v1959 = vsel %vm588, %v1951, 0.0
    %v1960 = vsel %vm588, %v1952, 0.0
    %v1961 = vadd.f32 %v1959, %v1960
    %v1962 = vsel %vm588, %v1953, 0.0
    %v1963 = vadd.f32 %v1961, %v1962
    %v1964 = vsel %vm588, %v1954, 0.0
    %v1965 = vadd.f32 %v1963, %v1964
    %1966 = vadd.xlane.f32.xlu0 %v1965
    %v1967 = vpop.xlane.xlu0 %1966
    %v1968 = vadd.f32 %v1967, %v1935
    %v1969 = vperm.slane %v1945, 0
    %v1970 = vperm.slane %v1946, 0
    %v1971 = vperm.slane %v1947, 0
    %v1972 = vperm.slane %v1948, 0
    %v1973 = vmul.f32 %v1780, %v1969
    %v1974 = vmul.f32 %v1781, %v1970
    %v1975 = vmul.f32 %v1782, %v1971
    %v1976 = vmul.f32 %v1783, %v1972
    %v1977 = vadd.f32 %v1973, %v1974
    %v1978 = vadd.f32 %v1977, %v1975
    %v1979 = vadd.f32 %v1978, %v1976
    %1980 = vadd.xlane.f32.xlu0 %v1979
    %v1981 = vpop.xlane.xlu0 %1980
    %v1982 = vperm.slane %v1968, 0
    %v1983 = vadd.f32 %v1981, %v1982
    %vm1984 = vcmask 7168
    %1985 = vst.msk [vmem:[%s4] sm:$0xff] %vm1984, %v1983
    // Predicated region
    $region30: #{value_network_forward.1} parent=1 // pred_check
      _
    $region31: #{value_network_forward.1} parent=1 // pred_check_branch
      %1987 = sbr.rel (0) target = $region33
    $region32: #{value_network_forward.1} parent=1 // pred_region
      _
    $region33: #{value_network_forward.1} parent=1 // pred_fallthru
      _
    // Predicated region
    $region34: #{value_network_forward.1} parent=1 // pred_check
      _
    $region35: #{value_network_forward.1} parent=1 // pred_check_branch
      %1989 = sbr.rel (0) target = $region37
    $region36: #{value_network_forward.1} parent=1 // pred_region
      _
    $region37: #{value_network_forward.1} parent=1 // pred_fallthru
      _
    %1990 = vsyncpa [#allocation3], 1
    %1991 = vsyncpa [#allocation5], 1

</llo_original>
